<compile_context>
chip_gen: v5e
topology: v5e:2x2
jax: 0.10.0
libtpu: 0.0.40
codegen_flags: <defaults>
</compile_context>

<pallas_src>
import jax
import jax.numpy as jnp
from jax.experimental import pallas as pl
from jax.experimental.pallas import tpu as pltpu


# ----------------------------------------------------------------------------
# Fused Pallas kernel (all layers + FC head, whole sequence resident in VMEM)
# ----------------------------------------------------------------------------
def _make_lstmnet_kernel(n_layers):
    L = n_layers

    def kernel(*refs):
        x_ref, h0_ref, c0_ref, wih0_ref, bias0_ref, whh0_ref = refs[:6]
        pos = 6
        if L > 1:
            wihr_ref, whhr_ref, biasr_ref = refs[pos:pos + 3]   # (L-1, H, 4H) x2, (L-1, 1, 4H)
            pos += 3
        wfc_ref, bfc_ref = refs[pos], refs[pos + 1]             # (H, O), (1, O)
        out_ref, hn_ref, cn_ref = refs[pos + 2], refs[pos + 3], refs[pos + 4]
        xproj_sc = refs[pos + 5]                                # (T*Bp, 4H)

        _, Bp, H = hn_ref.shape
        T = x_ref.shape[0] // Bp

        # --- Hoisted layer-0 input projection: one big MXU matmul over all
        #     timesteps (input already flat, so no in-kernel relayout), bias
        #     folded in.  Off the serial path; result stays in VMEM scratch.
        xproj_sc[...] = (
            jnp.dot(x_ref[...], wih0_ref[...],
                    preferred_element_type=jnp.float32)
            + bias0_ref[...])

        # --- Weight loads hoisted out of the recurrence (read once -> vregs).
        w_hh = [whh0_ref[...]]
        w_ih = [None]
        bias = [None]
        for l in range(1, L):
            w_ih.append(wihr_ref[l - 1])
            w_hh.append(whhr_ref[l - 1])
            bias.append(biasr_ref[l - 1])
        w_fc = wfc_ref[...]
        b_fc = bfc_ref[...]

        # Lane mask selecting the g (tanh) block of the [i, f, g, o] gates.
        lane = jax.lax.broadcasted_iota(jnp.int32, (Bp, 4 * H), 1)
        g_mask = (lane >= 2 * H) & (lane < 3 * H)

        def cell(gates, c_prev):
            # One sigmoid + one tanh over the full 4H-lane tile; per-gate
            # blocks sliced post-activation (2 EUP passes instead of 4).
            act = jnp.where(g_mask, jnp.tanh(gates), jax.nn.sigmoid(gates))
            i = act[:, 0 * H:1 * H]
            f = act[:, 1 * H:2 * H]
            g = act[:, 2 * H:3 * H]
            o = act[:, 3 * H:4 * H]
            c = f * c_prev + i * g
            h = o * jnp.tanh(c)
            return h, c

        # --- Initial state in the loop carry (vregs), with the recurrent
        #     projections h @ W_hh pre-issued for the first step.
        hs0 = tuple(h0_ref[l].astype(jnp.float32) for l in range(L))
        cs0 = tuple(c0_ref[l].astype(jnp.float32) for l in range(L))
        rec0 = tuple(
            jnp.dot(hs0[l], w_hh[l], preferred_element_type=jnp.float32)
            for l in range(L))

        def step(t, carry):
            hs, cs, recs = list(carry[0]), list(carry[1]), list(carry[2])
            start = pl.multiple_of(t * Bp, 8)
            # Layer 0: its W_hh matmul was pre-issued last iteration; only the
            # xproj add + cell are on the critical path here.
            gates0 = xproj_sc[pl.ds(start, Bp), :] + recs[0]
            h, c = cell(gates0, cs[0])
            hs[0], cs[0] = h, c
            # Pre-issue layer-0's recurrence for step t+1: independent of the
            # upper-layer work below, so it overlaps (wavefront).
            recs[0] = jnp.dot(h, w_hh[0], preferred_element_type=jnp.float32)
            for l in range(1, L):
                gates = (jnp.dot(h, w_ih[l],
                                 preferred_element_type=jnp.float32)
                         + recs[l] + bias[l])
                h, c = cell(gates, cs[l])
                hs[l], cs[l] = h, c
                # Pre-issue this layer's recurrence for step t+1.
                recs[l] = jnp.dot(h, w_hh[l],
                                  preferred_element_type=jnp.float32)
            return (tuple(hs), tuple(cs), tuple(recs))

        # Short fixed trip-count -> fully unroll for LLO scheduler visibility.
        hs, cs, _ = jax.lax.fori_loop(0, T, step, (hs0, cs0, rec0),
                                      unroll=True)

        # Final hidden/cell states written once (no per-step round-trips).
        for l in range(L):
            hn_ref[l] = hs[l].astype(hn_ref.dtype)
            cn_ref[l] = cs[l].astype(cn_ref.dtype)

        # Fused FC head: out = relu(h_top) @ W_fc^T + b_fc
        # (== self.fc(self.relu(out[:, -1])) in the PyTorch module).
        h_top = jnp.maximum(hs[L - 1], 0.0)
        out_ref[...] = (
            jnp.dot(h_top, w_fc, preferred_element_type=jnp.float32)
            + b_fc).astype(out_ref.dtype)

    return kernel


# ----------------------------------------------------------------------------
# Wrapper
# ----------------------------------------------------------------------------
def _full_spec(shape):
    nd = len(shape)
    return pl.BlockSpec(shape, lambda i, _n=nd: (0,) * _n)


@jax.jit
def lstmnet_forward(params, x, h):
    """x: (B, T, input_dim), h = (h0, c0) each (n_layers, B, H).

    Returns (out: (B, output_dim), (h_n, c_n)) — same as LSTMNet.forward.
    """
    h0_all, c0_all = h
    B, T, Din = x.shape
    L, _, H = h0_all.shape
    G = 4 * H
    O = params["fc"]["w_fc_t"].shape[-1]

    # Pad batch to the 8-row f32 sublane granularity; slice back afterwards.
    Bp = ((B + 7) // 8) * 8
    x_tbd = jnp.transpose(x, (1, 0, 2))          # (T, B, Din) time-major
    if Bp != B:
        x_tbd = jnp.pad(x_tbd, ((0, 0), (0, Bp - B), (0, 0)))
        h0_all = jnp.pad(h0_all, ((0, 0), (0, Bp - B), (0, 0)))
        c0_all = jnp.pad(c0_all, ((0, 0), (0, Bp - B), (0, 0)))
    # Flatten OUTSIDE the kernel so the in-kernel projection is a plain 2-D
    # matmul with no relayout.
    x_flat = x_tbd.reshape(T * Bp, Din)

    p0 = params["lstm"][0]
    args = [x_flat, h0_all, c0_all, p0["w_ih_t"], p0["bias"], p0["w_hh_t"]]
    if L > 1:
        # Upper layers: W_ih and W_hh kept SEPARATE (no concat fusion).
        w_ih_r = jnp.stack([p["w_ih_t"] for p in params["lstm"][1:]], axis=0)
        w_hh_r = jnp.stack([p["w_hh_t"] for p in params["lstm"][1:]], axis=0)
        bias_r = jnp.stack([p["bias"] for p in params["lstm"][1:]], axis=0)
        args += [w_ih_r, w_hh_r, bias_r]
    args += [params["fc"]["w_fc_t"], params["fc"]["b_fc"]]

    out_shapes = (
        jax.ShapeDtypeStruct((Bp, O), jnp.float32),
        jax.ShapeDtypeStruct((L, Bp, H), jnp.float32),
        jax.ShapeDtypeStruct((L, Bp, H), jnp.float32),
    )

    grid_spec = pltpu.PrefetchScalarGridSpec(
        num_scalar_prefetch=0,
        grid=(1,),                                    # recurrence runs in-kernel
        in_specs=[_full_spec(a.shape) for a in args],
        out_specs=[_full_spec(s.shape) for s in out_shapes],
        scratch_shapes=[
            pltpu.VMEM((T * Bp, G), jnp.float32),     # hoisted x @ W_ih0^T + b
        ],
    )

    out_p, hn_p, cn_p = pl.pallas_call(
        _make_lstmnet_kernel(L),
        out_shape=out_shapes,
        grid_spec=grid_spec,
        compiler_params=pltpu.CompilerParams(
            dimension_semantics=("arbitrary",)),      # serial recurrence
    )(*args)

    return out_p[:B], (hn_p[:, :B], cn_p[:, :B])


def make_params(key, input_dim, hidden_dim, output_dim, n_layers):
    """Deterministic PyTorch-style init: U(-1/sqrt(H), 1/sqrt(H))."""
    H = hidden_dim
    bound = 1.0 / jnp.sqrt(jnp.float32(H))
    lstm = []
    for layer in range(n_layers):
        d_in = input_dim if layer == 0 else H
        key, k1, k2, k3, k4 = jax.random.split(key, 5)
        w_ih = jax.random.uniform(k1, (4 * H, d_in), jnp.float32, -bound, bound)
        w_hh = jax.random.uniform(k2, (4 * H, H), jnp.float32, -bound, bound)
        b_ih = jax.random.uniform(k3, (4 * H,), jnp.float32, -bound, bound)
        b_hh = jax.random.uniform(k4, (4 * H,), jnp.float32, -bound, bound)
        lstm.append(dict(
            w_ih_t=w_ih.T,                              # (Din or H, 4H)
            w_hh_t=w_hh.T,                              # (H, 4H)
            bias=(b_ih + b_hh).reshape(1, 4 * H),       # folded (1, 4H)
        ))
    key, k1, k2 = jax.random.split(key, 3)
    w_fc = jax.random.uniform(k1, (output_dim, H), jnp.float32, -bound, bound)
    b_fc = jax.random.uniform(k2, (output_dim,), jnp.float32, -bound, bound)
    return {"lstm": lstm,
            "fc": dict(w_fc_t=w_fc.T, b_fc=b_fc.reshape(1, output_dim))}


if __name__ == "__main__":
    B, T = 2, 8
    input_dim, hidden_dim, output_dim, n_layers = 16, 32, 4, 2

    key = jax.random.PRNGKey(0)
    kp, kx = jax.random.split(key)
    params = make_params(kp, input_dim, hidden_dim, output_dim, n_layers)

    x = jax.random.normal(kx, (B, T, input_dim), jnp.float32)
    h0 = jnp.zeros((n_layers, B, hidden_dim), jnp.float32)   # init_hidden()
    c0 = jnp.zeros((n_layers, B, hidden_dim), jnp.float32)

    out, (h_n, c_n) = lstmnet_forward(params, x, (h0, c0))
    jax.block_until_ready((out, h_n, c_n))

    assert out.shape == (B, output_dim)
    assert h_n.shape == (n_layers, B, hidden_dim)
    assert c_n.shape == (n_layers, B, hidden_dim)
    print("KERNEL_OK")
</pallas_src>

<mosaic_0001>
module attributes {stable_mosaic.version = 11 : i64} {
  func.func @kernel(%arg0: i32, %arg1: memref<64x16xf32, #tpu.memory_space<vmem>>, %arg2: memref<2x8x32xf32, #tpu.memory_space<vmem>>, %arg3: memref<2x8x32xf32, #tpu.memory_space<vmem>>, %arg4: memref<16x128xf32, #tpu.memory_space<vmem>>, %arg5: memref<1x128xf32, #tpu.memory_space<vmem>>, %arg6: memref<32x128xf32, #tpu.memory_space<vmem>>, %arg7: memref<1x32x128xf32, #tpu.memory_space<vmem>>, %arg8: memref<1x32x128xf32, #tpu.memory_space<vmem>>, %arg9: memref<1x1x128xf32, #tpu.memory_space<vmem>>, %arg10: memref<32x4xf32, #tpu.memory_space<vmem>>, %arg11: memref<1x4xf32, #tpu.memory_space<vmem>>, %arg12: memref<8x4xf32, #tpu.memory_space<vmem>>, %arg13: memref<2x8x32xf32, #tpu.memory_space<vmem>>, %arg14: memref<2x8x32xf32, #tpu.memory_space<vmem>>, %arg15: memref<64x128xf32, #tpu.memory_space<vmem>>) attributes {dimension_semantics = [#tpu.dimension_semantics<arbitrary>], iteration_bounds = array<i64: 1>, scalar_prefetch = 0 : i64, scratch_operands = 1 : i64, tpu.core_type = #tpu.core_type<tc>, window_params = [{pipeline_mode = #tpu.pipeline_mode<synchronous>, transform_indices = @transform_0, window_bounds = array<i64: 64, 16>}, {pipeline_mode = #tpu.pipeline_mode<synchronous>, transform_indices = @transform_1, window_bounds = array<i64: 2, 8, 32>}, {pipeline_mode = #tpu.pipeline_mode<synchronous>, transform_indices = @transform_2, window_bounds = array<i64: 2, 8, 32>}, {pipeline_mode = #tpu.pipeline_mode<synchronous>, transform_indices = @transform_3, window_bounds = array<i64: 16, 128>}, {pipeline_mode = #tpu.pipeline_mode<synchronous>, transform_indices = @transform_4, window_bounds = array<i64: 1, 128>}, {pipeline_mode = #tpu.pipeline_mode<synchronous>, transform_indices = @transform_5, window_bounds = array<i64: 32, 128>}, {pipeline_mode = #tpu.pipeline_mode<synchronous>, transform_indices = @transform_6, window_bounds = array<i64: 1, 32, 128>}, {pipeline_mode = #tpu.pipeline_mode<synchronous>, transform_indices = @transform_7, window_bounds = array<i64: 1, 32, 128>}, {pipeline_mode = #tpu.pipeline_mode<synchronous>, transform_indices = @transform_8, window_bounds = array<i64: 1, 1, 128>}, {pipeline_mode = #tpu.pipeline_mode<synchronous>, transform_indices = @transform_9, window_bounds = array<i64: 32, 4>}, {pipeline_mode = #tpu.pipeline_mode<synchronous>, transform_indices = @transform_10, window_bounds = array<i64: 1, 4>}, {pipeline_mode = #tpu.pipeline_mode<synchronous>, transform_indices = @transform_11, window_bounds = array<i64: 8, 4>}, {pipeline_mode = #tpu.pipeline_mode<synchronous>, transform_indices = @transform_12, window_bounds = array<i64: 2, 8, 32>}, {pipeline_mode = #tpu.pipeline_mode<synchronous>, transform_indices = @transform_13, window_bounds = array<i64: 2, 8, 32>}]} {
    %c0 = arith.constant 0 : index
    %c0_0 = arith.constant 0 : index
    %0 = vector.load %arg1[%c0, %c0_0] : memref<64x16xf32, #tpu.memory_space<vmem>>, vector<64x16xf32>
    %c0_1 = arith.constant 0 : index
    %c0_2 = arith.constant 0 : index
    %1 = vector.load %arg4[%c0_1, %c0_2] : memref<16x128xf32, #tpu.memory_space<vmem>>, vector<16x128xf32>
    %cst = arith.constant dense<0.000000e+00> : vector<64x128xf32>
    %2 = tpu.matmul %0, %1, %cst {dimension_numbers = #tpu.dot_dimension_numbers<[1], [0], [0], [1], [0, 0, 1, 1], [], []>} : vector<64x16xf32>, vector<16x128xf32>, vector<64x128xf32> -> vector<64x128xf32>
    %c0_3 = arith.constant 0 : index
    %c0_4 = arith.constant 0 : index
    %3 = vector.load %arg5[%c0_3, %c0_4] : memref<1x128xf32, #tpu.memory_space<vmem>>, vector<1x128xf32>
    %4 = vector.broadcast %3 : vector<1x128xf32> to vector<64x128xf32>
    %5 = arith.addf %2, %4 : vector<64x128xf32>
    %c0_5 = arith.constant 0 : index
    %c0_6 = arith.constant 0 : index
    %6 = vector.load %arg15[%c0_5, %c0_6] : memref<64x128xf32, #tpu.memory_space<vmem>>, vector<64x128xf32>
    tpu.vector_store %arg15[%c0_5, %c0_6], %5 {strides = array<i32>} : memref<64x128xf32, #tpu.memory_space<vmem>>, vector<64x128xf32>,
    %c0_7 = arith.constant 0 : index
    %c0_8 = arith.constant 0 : index
    %7 = vector.load %arg6[%c0_7, %c0_8] : memref<32x128xf32, #tpu.memory_space<vmem>>, vector<32x128xf32>
    %c0_9 = arith.constant 0 : index
    %c0_10 = arith.constant 0 : index
    %c0_11 = arith.constant 0 : index
    %8 = vector.load %arg7[%c0_9, %c0_10, %c0_11] : memref<1x32x128xf32, #tpu.memory_space<vmem>>, vector<1x32x128xf32>
    %9 = vector.shape_cast %8 : vector<1x32x128xf32> to vector<32x128xf32>
    %c0_12 = arith.constant 0 : index
    %c0_13 = arith.constant 0 : index
    %c0_14 = arith.constant 0 : index
    %10 = vector.load %arg8[%c0_12, %c0_13, %c0_14] : memref<1x32x128xf32, #tpu.memory_space<vmem>>, vector<1x32x128xf32>
    %11 = vector.shape_cast %10 : vector<1x32x128xf32> to vector<32x128xf32>
    %c0_15 = arith.constant 0 : index
    %c0_16 = arith.constant 0 : index
    %c0_17 = arith.constant 0 : index
    %12 = vector.load %arg9[%c0_15, %c0_16, %c0_17] : memref<1x1x128xf32, #tpu.memory_space<vmem>>, vector<1x1x128xf32>
    %13 = vector.shape_cast %12 : vector<1x1x128xf32> to vector<1x128xf32>
    %c0_18 = arith.constant 0 : index
    %c0_19 = arith.constant 0 : index
    %14 = vector.load %arg10[%c0_18, %c0_19] : memref<32x4xf32, #tpu.memory_space<vmem>>, vector<32x4xf32>
    %c0_20 = arith.constant 0 : index
    %c0_21 = arith.constant 0 : index
    %15 = vector.load %arg11[%c0_20, %c0_21] : memref<1x4xf32, #tpu.memory_space<vmem>>, vector<1x4xf32>
    %16 = tpu.iota {dimensions = array<i32: 1>} : vector<8x128xi32>
    %c64_i32 = arith.constant 64 : i32
    %17 = vector.broadcast %c64_i32 : i32 to vector<8x128xi32>
    %18 = arith.cmpi sge, %16, %17 : vector<8x128xi32>
    %c96_i32 = arith.constant 96 : i32
    %19 = vector.broadcast %c96_i32 : i32 to vector<8x128xi32>
    %20 = arith.cmpi slt, %16, %19 : vector<8x128xi32>
    %21 = arith.andi %18, %20 : vector<8x128xi1>
    %c0_22 = arith.constant 0 : index
    %c0_23 = arith.constant 0 : index
    %c0_24 = arith.constant 0 : index
    %22 = vector.load %arg2[%c0_22, %c0_23, %c0_24] : memref<2x8x32xf32, #tpu.memory_space<vmem>>, vector<1x8x32xf32>
    %23 = vector.shape_cast %22 : vector<1x8x32xf32> to vector<8x32xf32>
    %c1 = arith.constant 1 : index
    %c0_25 = arith.constant 0 : index
    %c0_26 = arith.constant 0 : index
    %24 = vector.load %arg2[%c1, %c0_25, %c0_26] : memref<2x8x32xf32, #tpu.memory_space<vmem>>, vector<1x8x32xf32>
    %25 = vector.shape_cast %24 : vector<1x8x32xf32> to vector<8x32xf32>
    %c0_27 = arith.constant 0 : index
    %c0_28 = arith.constant 0 : index
    %c0_29 = arith.constant 0 : index
    %26 = vector.load %arg3[%c0_27, %c0_28, %c0_29] : memref<2x8x32xf32, #tpu.memory_space<vmem>>, vector<1x8x32xf32>
    %27 = vector.shape_cast %26 : vector<1x8x32xf32> to vector<8x32xf32>
    %c1_30 = arith.constant 1 : index
    %c0_31 = arith.constant 0 : index
    %c0_32 = arith.constant 0 : index
    %28 = vector.load %arg3[%c1_30, %c0_31, %c0_32] : memref<2x8x32xf32, #tpu.memory_space<vmem>>, vector<1x8x32xf32>
    %29 = vector.shape_cast %28 : vector<1x8x32xf32> to vector<8x32xf32>
    %cst_33 = arith.constant dense<0.000000e+00> : vector<8x128xf32>
    %30 = tpu.matmul %23, %7, %cst_33 {dimension_numbers = #tpu.dot_dimension_numbers<[1], [0], [0], [1], [0, 0, 1, 1], [], []>} : vector<8x32xf32>, vector<32x128xf32>, vector<8x128xf32> -> vector<8x128xf32>
    %cst_34 = arith.constant dense<0.000000e+00> : vector<8x128xf32>
    %31 = tpu.matmul %25, %11, %cst_34 {dimension_numbers = #tpu.dot_dimension_numbers<[1], [0], [0], [1], [0, 0, 1, 1], [], []>} : vector<8x32xf32>, vector<32x128xf32>, vector<8x128xf32> -> vector<8x128xf32>
    %c0_i32 = arith.constant 0 : i32
    %c8_i32 = arith.constant 8 : i32
    %32 = arith.muli %c0_i32, %c8_i32 : i32
    %33 = tpu.assume_multiple %32, 8 : i32
    %34 = arith.index_cast %33 : i32 to index
    %c0_35 = arith.constant 0 : index
    %35 = vector.load %arg15[%34, %c0_35] : memref<64x128xf32, #tpu.memory_space<vmem>>, vector<8x128xf32>
    %36 = arith.addf %35, %30 : vector<8x128xf32>
    %37 = math.tanh %36 : vector<8x128xf32>
    %38 = arith.negf %36 : vector<8x128xf32>
    %39 = math.exp %38 : vector<8x128xf32>
    %cst_36 = arith.constant 1.000000e+00 : f32
    %40 = vector.broadcast %cst_36 : f32 to vector<8x128xf32>
    %41 = arith.addf %40, %39 : vector<8x128xf32>
    %42 = arith.divf %40, %41 : vector<8x128xf32>
    %43 = arith.select %21, %37, %42 : vector<8x128xi1>, vector<8x128xf32>
    %44 = vector.extract_strided_slice %43 {offsets = [0, 0], sizes = [8, 32], strides = [1, 1]} : vector<8x128xf32> to vector<8x32xf32>
    %45 = vector.extract_strided_slice %43 {offsets = [0, 32], sizes = [8, 32], strides = [1, 1]} : vector<8x128xf32> to vector<8x32xf32>
    %46 = vector.extract_strided_slice %43 {offsets = [0, 64], sizes = [8, 32], strides = [1, 1]} : vector<8x128xf32> to vector<8x32xf32>
    %47 = vector.extract_strided_slice %43 {offsets = [0, 96], sizes = [8, 32], strides = [1, 1]} : vector<8x128xf32> to vector<8x32xf32>
    %48 = arith.mulf %45, %27 : vector<8x32xf32>
    %49 = arith.mulf %44, %46 : vector<8x32xf32>
    %50 = arith.addf %48, %49 : vector<8x32xf32>
    %51 = math.tanh %50 : vector<8x32xf32>
    %52 = arith.mulf %47, %51 : vector<8x32xf32>
    %cst_37 = arith.constant dense<0.000000e+00> : vector<8x128xf32>
    %53 = tpu.matmul %52, %7, %cst_37 {dimension_numbers = #tpu.dot_dimension_numbers<[1], [0], [0], [1], [0, 0, 1, 1], [], []>} : vector<8x32xf32>, vector<32x128xf32>, vector<8x128xf32> -> vector<8x128xf32>
    %cst_38 = arith.constant dense<0.000000e+00> : vector<8x128xf32>
    %54 = tpu.matmul %52, %9, %cst_38 {dimension_numbers = #tpu.dot_dimension_numbers<[1], [0], [0], [1], [0, 0, 1, 1], [], []>} : vector<8x32xf32>, vector<32x128xf32>, vector<8x128xf32> -> vector<8x128xf32>
    %55 = arith.addf %54, %31 : vector<8x128xf32>
    %56 = vector.broadcast %13 : vector<1x128xf32> to vector<8x128xf32>
    %57 = arith.addf %55, %56 : vector<8x128xf32>
    %58 = math.tanh %57 : vector<8x128xf32>
    %59 = arith.negf %57 : vector<8x128xf32>
    %60 = math.exp %59 : vector<8x128xf32>
    %cst_39 = arith.constant 1.000000e+00 : f32
    %61 = vector.broadcast %cst_39 : f32 to vector<8x128xf32>
    %62 = arith.addf %61, %60 : vector<8x128xf32>
    %63 = arith.divf %61, %62 : vector<8x128xf32>
    %64 = arith.select %21, %58, %63 : vector<8x128xi1>, vector<8x128xf32>
    %65 = vector.extract_strided_slice %64 {offsets = [0, 0], sizes = [8, 32], strides = [1, 1]} : vector<8x128xf32> to vector<8x32xf32>
    %66 = vector.extract_strided_slice %64 {offsets = [0, 32], sizes = [8, 32], strides = [1, 1]} : vector<8x128xf32> to vector<8x32xf32>
    %67 = vector.extract_strided_slice %64 {offsets = [0, 64], sizes = [8, 32], strides = [1, 1]} : vector<8x128xf32> to vector<8x32xf32>
    %68 = vector.extract_strided_slice %64 {offsets = [0, 96], sizes = [8, 32], strides = [1, 1]} : vector<8x128xf32> to vector<8x32xf32>
    %69 = arith.mulf %66, %29 : vector<8x32xf32>
    %70 = arith.mulf %65, %67 : vector<8x32xf32>
    %71 = arith.addf %69, %70 : vector<8x32xf32>
    %72 = math.tanh %71 : vector<8x32xf32>
    %73 = arith.mulf %68, %72 : vector<8x32xf32>
    %cst_40 = arith.constant dense<0.000000e+00> : vector<8x128xf32>
    %74 = tpu.matmul %73, %11, %cst_40 {dimension_numbers = #tpu.dot_dimension_numbers<[1], [0], [0], [1], [0, 0, 1, 1], [], []>} : vector<8x32xf32>, vector<32x128xf32>, vector<8x128xf32> -> vector<8x128xf32>
    %c1_i32 = arith.constant 1 : i32
    %c8_i32_41 = arith.constant 8 : i32
    %75 = arith.muli %c1_i32, %c8_i32_41 : i32
    %76 = tpu.assume_multiple %75, 8 : i32
    %77 = arith.index_cast %76 : i32 to index
    %c0_42 = arith.constant 0 : index
    %78 = vector.load %arg15[%77, %c0_42] : memref<64x128xf32, #tpu.memory_space<vmem>>, vector<8x128xf32>
    %79 = arith.addf %78, %53 : vector<8x128xf32>
    %80 = math.tanh %79 : vector<8x128xf32>
    %81 = arith.negf %79 : vector<8x128xf32>
    %82 = math.exp %81 : vector<8x128xf32>
    %cst_43 = arith.constant 1.000000e+00 : f32
    %83 = vector.broadcast %cst_43 : f32 to vector<8x128xf32>
    %84 = arith.addf %83, %82 : vector<8x128xf32>
    %85 = arith.divf %83, %84 : vector<8x128xf32>
    %86 = arith.select %21, %80, %85 : vector<8x128xi1>, vector<8x128xf32>
    %87 = vector.extract_strided_slice %86 {offsets = [0, 0], sizes = [8, 32], strides = [1, 1]} : vector<8x128xf32> to vector<8x32xf32>
    %88 = vector.extract_strided_slice %86 {offsets = [0, 32], sizes = [8, 32], strides = [1, 1]} : vector<8x128xf32> to vector<8x32xf32>
    %89 = vector.extract_strided_slice %86 {offsets = [0, 64], sizes = [8, 32], strides = [1, 1]} : vector<8x128xf32> to vector<8x32xf32>
    %90 = vector.extract_strided_slice %86 {offsets = [0, 96], sizes = [8, 32], strides = [1, 1]} : vector<8x128xf32> to vector<8x32xf32>
    %91 = arith.mulf %88, %50 : vector<8x32xf32>
    %92 = arith.mulf %87, %89 : vector<8x32xf32>
    %93 = arith.addf %91, %92 : vector<8x32xf32>
    %94 = math.tanh %93 : vector<8x32xf32>
    %95 = arith.mulf %90, %94 : vector<8x32xf32>
    %cst_44 = arith.constant dense<0.000000e+00> : vector<8x128xf32>
    %96 = tpu.matmul %95, %7, %cst_44 {dimension_numbers = #tpu.dot_dimension_numbers<[1], [0], [0], [1], [0, 0, 1, 1], [], []>} : vector<8x32xf32>, vector<32x128xf32>, vector<8x128xf32> -> vector<8x128xf32>
    %cst_45 = arith.constant dense<0.000000e+00> : vector<8x128xf32>
    %97 = tpu.matmul %95, %9, %cst_45 {dimension_numbers = #tpu.dot_dimension_numbers<[1], [0], [0], [1], [0, 0, 1, 1], [], []>} : vector<8x32xf32>, vector<32x128xf32>, vector<8x128xf32> -> vector<8x128xf32>
    %98 = arith.addf %97, %74 : vector<8x128xf32>
    %99 = vector.broadcast %13 : vector<1x128xf32> to vector<8x128xf32>
    %100 = arith.addf %98, %99 : vector<8x128xf32>
    %101 = math.tanh %100 : vector<8x128xf32>
    %102 = arith.negf %100 : vector<8x128xf32>
    %103 = math.exp %102 : vector<8x128xf32>
    %cst_46 = arith.constant 1.000000e+00 : f32
    %104 = vector.broadcast %cst_46 : f32 to vector<8x128xf32>
    %105 = arith.addf %104, %103 : vector<8x128xf32>
    %106 = arith.divf %104, %105 : vector<8x128xf32>
    %107 = arith.select %21, %101, %106 : vector<8x128xi1>, vector<8x128xf32>
    %108 = vector.extract_strided_slice %107 {offsets = [0, 0], sizes = [8, 32], strides = [1, 1]} : vector<8x128xf32> to vector<8x32xf32>
    %109 = vector.extract_strided_slice %107 {offsets = [0, 32], sizes = [8, 32], strides = [1, 1]} : vector<8x128xf32> to vector<8x32xf32>
    %110 = vector.extract_strided_slice %107 {offsets = [0, 64], sizes = [8, 32], strides = [1, 1]} : vector<8x128xf32> to vector<8x32xf32>
    %111 = vector.extract_strided_slice %107 {offsets = [0, 96], sizes = [8, 32], strides = [1, 1]} : vector<8x128xf32> to vector<8x32xf32>
    %112 = arith.mulf %109, %71 : vector<8x32xf32>
    %113 = arith.mulf %108, %110 : vector<8x32xf32>
    %114 = arith.addf %112, %113 : vector<8x32xf32>
    %115 = math.tanh %114 : vector<8x32xf32>
    %116 = arith.mulf %111, %115 : vector<8x32xf32>
    %cst_47 = arith.constant dense<0.000000e+00> : vector<8x128xf32>
    %117 = tpu.matmul %116, %11, %cst_47 {dimension_numbers = #tpu.dot_dimension_numbers<[1], [0], [0], [1], [0, 0, 1, 1], [], []>} : vector<8x32xf32>, vector<32x128xf32>, vector<8x128xf32> -> vector<8x128xf32>
    %c2_i32 = arith.constant 2 : i32
    %c8_i32_48 = arith.constant 8 : i32
    %118 = arith.muli %c2_i32, %c8_i32_48 : i32
    %119 = tpu.assume_multiple %118, 8 : i32
    %120 = arith.index_cast %119 : i32 to index
    %c0_49 = arith.constant 0 : index
    %121 = vector.load %arg15[%120, %c0_49] : memref<64x128xf32, #tpu.memory_space<vmem>>, vector<8x128xf32>
    %122 = arith.addf %121, %96 : vector<8x128xf32>
    %123 = math.tanh %122 : vector<8x128xf32>
    %124 = arith.negf %122 : vector<8x128xf32>
    %125 = math.exp %124 : vector<8x128xf32>
    %cst_50 = arith.constant 1.000000e+00 : f32
    %126 = vector.broadcast %cst_50 : f32 to vector<8x128xf32>
    %127 = arith.addf %126, %125 : vector<8x128xf32>
    %128 = arith.divf %126, %127 : vector<8x128xf32>
    %129 = arith.select %21, %123, %128 : vector<8x128xi1>, vector<8x128xf32>
    %130 = vector.extract_strided_slice %129 {offsets = [0, 0], sizes = [8, 32], strides = [1, 1]} : vector<8x128xf32> to vector<8x32xf32>
    %131 = vector.extract_strided_slice %129 {offsets = [0, 32], sizes = [8, 32], strides = [1, 1]} : vector<8x128xf32> to vector<8x32xf32>
    %132 = vector.extract_strided_slice %129 {offsets = [0, 64], sizes = [8, 32], strides = [1, 1]} : vector<8x128xf32> to vector<8x32xf32>
    %133 = vector.extract_strided_slice %129 {offsets = [0, 96], sizes = [8, 32], strides = [1, 1]} : vector<8x128xf32> to vector<8x32xf32>
    %134 = arith.mulf %131, %93 : vector<8x32xf32>
    %135 = arith.mulf %130, %132 : vector<8x32xf32>
    %136 = arith.addf %134, %135 : vector<8x32xf32>
    %137 = math.tanh %136 : vector<8x32xf32>
    %138 = arith.mulf %133, %137 : vector<8x32xf32>
    %cst_51 = arith.constant dense<0.000000e+00> : vector<8x128xf32>
    %139 = tpu.matmul %138, %7, %cst_51 {dimension_numbers = #tpu.dot_dimension_numbers<[1], [0], [0], [1], [0, 0, 1, 1], [], []>} : vector<8x32xf32>, vector<32x128xf32>, vector<8x128xf32> -> vector<8x128xf32>
    %cst_52 = arith.constant dense<0.000000e+00> : vector<8x128xf32>
    %140 = tpu.matmul %138, %9, %cst_52 {dimension_numbers = #tpu.dot_dimension_numbers<[1], [0], [0], [1], [0, 0, 1, 1], [], []>} : vector<8x32xf32>, vector<32x128xf32>, vector<8x128xf32> -> vector<8x128xf32>
    %141 = arith.addf %140, %117 : vector<8x128xf32>
    %142 = vector.broadcast %13 : vector<1x128xf32> to vector<8x128xf32>
    %143 = arith.addf %141, %142 : vector<8x128xf32>
    %144 = math.tanh %143 : vector<8x128xf32>
    %145 = arith.negf %143 : vector<8x128xf32>
    %146 = math.exp %145 : vector<8x128xf32>
    %cst_53 = arith.constant 1.000000e+00 : f32
    %147 = vector.broadcast %cst_53 : f32 to vector<8x128xf32>
    %148 = arith.addf %147, %146 : vector<8x128xf32>
    %149 = arith.divf %147, %148 : vector<8x128xf32>
    %150 = arith.select %21, %144, %149 : vector<8x128xi1>, vector<8x128xf32>
    %151 = vector.extract_strided_slice %150 {offsets = [0, 0], sizes = [8, 32], strides = [1, 1]} : vector<8x128xf32> to vector<8x32xf32>
    %152 = vector.extract_strided_slice %150 {offsets = [0, 32], sizes = [8, 32], strides = [1, 1]} : vector<8x128xf32> to vector<8x32xf32>
    %153 = vector.extract_strided_slice %150 {offsets = [0, 64], sizes = [8, 32], strides = [1, 1]} : vector<8x128xf32> to vector<8x32xf32>
    %154 = vector.extract_strided_slice %150 {offsets = [0, 96], sizes = [8, 32], strides = [1, 1]} : vector<8x128xf32> to vector<8x32xf32>
    %155 = arith.mulf %152, %114 : vector<8x32xf32>
    %156 = arith.mulf %151, %153 : vector<8x32xf32>
    %157 = arith.addf %155, %156 : vector<8x32xf32>
    %158 = math.tanh %157 : vector<8x32xf32>
    %159 = arith.mulf %154, %158 : vector<8x32xf32>
    %cst_54 = arith.constant dense<0.000000e+00> : vector<8x128xf32>
    %160 = tpu.matmul %159, %11, %cst_54 {dimension_numbers = #tpu.dot_dimension_numbers<[1], [0], [0], [1], [0, 0, 1, 1], [], []>} : vector<8x32xf32>, vector<32x128xf32>, vector<8x128xf32> -> vector<8x128xf32>
    %c3_i32 = arith.constant 3 : i32
    %c8_i32_55 = arith.constant 8 : i32
    %161 = arith.muli %c3_i32, %c8_i32_55 : i32
    %162 = tpu.assume_multiple %161, 8 : i32
    %163 = arith.index_cast %162 : i32 to index
    %c0_56 = arith.constant 0 : index
    %164 = vector.load %arg15[%163, %c0_56] : memref<64x128xf32, #tpu.memory_space<vmem>>, vector<8x128xf32>
    %165 = arith.addf %164, %139 : vector<8x128xf32>
    %166 = math.tanh %165 : vector<8x128xf32>
    %167 = arith.negf %165 : vector<8x128xf32>
    %168 = math.exp %167 : vector<8x128xf32>
    %cst_57 = arith.constant 1.000000e+00 : f32
    %169 = vector.broadcast %cst_57 : f32 to vector<8x128xf32>
    %170 = arith.addf %169, %168 : vector<8x128xf32>
    %171 = arith.divf %169, %170 : vector<8x128xf32>
    %172 = arith.select %21, %166, %171 : vector<8x128xi1>, vector<8x128xf32>
    %173 = vector.extract_strided_slice %172 {offsets = [0, 0], sizes = [8, 32], strides = [1, 1]} : vector<8x128xf32> to vector<8x32xf32>
    %174 = vector.extract_strided_slice %172 {offsets = [0, 32], sizes = [8, 32], strides = [1, 1]} : vector<8x128xf32> to vector<8x32xf32>
    %175 = vector.extract_strided_slice %172 {offsets = [0, 64], sizes = [8, 32], strides = [1, 1]} : vector<8x128xf32> to vector<8x32xf32>
    %176 = vector.extract_strided_slice %172 {offsets = [0, 96], sizes = [8, 32], strides = [1, 1]} : vector<8x128xf32> to vector<8x32xf32>
    %177 = arith.mulf %174, %136 : vector<8x32xf32>
    %178 = arith.mulf %173, %175 : vector<8x32xf32>
    %179 = arith.addf %177, %178 : vector<8x32xf32>
    %180 = math.tanh %179 : vector<8x32xf32>
    %181 = arith.mulf %176, %180 : vector<8x32xf32>
    %cst_58 = arith.constant dense<0.000000e+00> : vector<8x128xf32>
    %182 = tpu.matmul %181, %7, %cst_58 {dimension_numbers = #tpu.dot_dimension_numbers<[1], [0], [0], [1], [0, 0, 1, 1], [], []>} : vector<8x32xf32>, vector<32x128xf32>, vector<8x128xf32> -> vector<8x128xf32>
    %cst_59 = arith.constant dense<0.000000e+00> : vector<8x128xf32>
    %183 = tpu.matmul %181, %9, %cst_59 {dimension_numbers = #tpu.dot_dimension_numbers<[1], [0], [0], [1], [0, 0, 1, 1], [], []>} : vector<8x32xf32>, vector<32x128xf32>, vector<8x128xf32> -> vector<8x128xf32>
    %184 = arith.addf %183, %160 : vector<8x128xf32>
    %185 = vector.broadcast %13 : vector<1x128xf32> to vector<8x128xf32>
    %186 = arith.addf %184, %185 : vector<8x128xf32>
    %187 = math.tanh %186 : vector<8x128xf32>
    %188 = arith.negf %186 : vector<8x128xf32>
    %189 = math.exp %188 : vector<8x128xf32>
    %cst_60 = arith.constant 1.000000e+00 : f32
    %190 = vector.broadcast %cst_60 : f32 to vector<8x128xf32>
    %191 = arith.addf %190, %189 : vector<8x128xf32>
    %192 = arith.divf %190, %191 : vector<8x128xf32>
    %193 = arith.select %21, %187, %192 : vector<8x128xi1>, vector<8x128xf32>
    %194 = vector.extract_strided_slice %193 {offsets = [0, 0], sizes = [8, 32], strides = [1, 1]} : vector<8x128xf32> to vector<8x32xf32>
    %195 = vector.extract_strided_slice %193 {offsets = [0, 32], sizes = [8, 32], strides = [1, 1]} : vector<8x128xf32> to vector<8x32xf32>
    %196 = vector.extract_strided_slice %193 {offsets = [0, 64], sizes = [8, 32], strides = [1, 1]} : vector<8x128xf32> to vector<8x32xf32>
    %197 = vector.extract_strided_slice %193 {offsets = [0, 96], sizes = [8, 32], strides = [1, 1]} : vector<8x128xf32> to vector<8x32xf32>
    %198 = arith.mulf %195, %157 : vector<8x32xf32>
    %199 = arith.mulf %194, %196 : vector<8x32xf32>
    %200 = arith.addf %198, %199 : vector<8x32xf32>
    %201 = math.tanh %200 : vector<8x32xf32>
    %202 = arith.mulf %197, %201 : vector<8x32xf32>
    %cst_61 = arith.constant dense<0.000000e+00> : vector<8x128xf32>
    %203 = tpu.matmul %202, %11, %cst_61 {dimension_numbers = #tpu.dot_dimension_numbers<[1], [0], [0], [1], [0, 0, 1, 1], [], []>} : vector<8x32xf32>, vector<32x128xf32>, vector<8x128xf32> -> vector<8x128xf32>
    %c4_i32 = arith.constant 4 : i32
    %c8_i32_62 = arith.constant 8 : i32
    %204 = arith.muli %c4_i32, %c8_i32_62 : i32
    %205 = tpu.assume_multiple %204, 8 : i32
    %206 = arith.index_cast %205 : i32 to index
    %c0_63 = arith.constant 0 : index
    %207 = vector.load %arg15[%206, %c0_63] : memref<64x128xf32, #tpu.memory_space<vmem>>, vector<8x128xf32>
    %208 = arith.addf %207, %182 : vector<8x128xf32>
    %209 = math.tanh %208 : vector<8x128xf32>
    %210 = arith.negf %208 : vector<8x128xf32>
    %211 = math.exp %210 : vector<8x128xf32>
    %cst_64 = arith.constant 1.000000e+00 : f32
    %212 = vector.broadcast %cst_64 : f32 to vector<8x128xf32>
    %213 = arith.addf %212, %211 : vector<8x128xf32>
    %214 = arith.divf %212, %213 : vector<8x128xf32>
    %215 = arith.select %21, %209, %214 : vector<8x128xi1>, vector<8x128xf32>
    %216 = vector.extract_strided_slice %215 {offsets = [0, 0], sizes = [8, 32], strides = [1, 1]} : vector<8x128xf32> to vector<8x32xf32>
    %217 = vector.extract_strided_slice %215 {offsets = [0, 32], sizes = [8, 32], strides = [1, 1]} : vector<8x128xf32> to vector<8x32xf32>
    %218 = vector.extract_strided_slice %215 {offsets = [0, 64], sizes = [8, 32], strides = [1, 1]} : vector<8x128xf32> to vector<8x32xf32>
    %219 = vector.extract_strided_slice %215 {offsets = [0, 96], sizes = [8, 32], strides = [1, 1]} : vector<8x128xf32> to vector<8x32xf32>
    %220 = arith.mulf %217, %179 : vector<8x32xf32>
    %221 = arith.mulf %216, %218 : vector<8x32xf32>
    %222 = arith.addf %220, %221 : vector<8x32xf32>
    %223 = math.tanh %222 : vector<8x32xf32>
    %224 = arith.mulf %219, %223 : vector<8x32xf32>
    %cst_65 = arith.constant dense<0.000000e+00> : vector<8x128xf32>
    %225 = tpu.matmul %224, %7, %cst_65 {dimension_numbers = #tpu.dot_dimension_numbers<[1], [0], [0], [1], [0, 0, 1, 1], [], []>} : vector<8x32xf32>, vector<32x128xf32>, vector<8x128xf32> -> vector<8x128xf32>
    %cst_66 = arith.constant dense<0.000000e+00> : vector<8x128xf32>
    %226 = tpu.matmul %224, %9, %cst_66 {dimension_numbers = #tpu.dot_dimension_numbers<[1], [0], [0], [1], [0, 0, 1, 1], [], []>} : vector<8x32xf32>, vector<32x128xf32>, vector<8x128xf32> -> vector<8x128xf32>
    %227 = arith.addf %226, %203 : vector<8x128xf32>
    %228 = vector.broadcast %13 : vector<1x128xf32> to vector<8x128xf32>
    %229 = arith.addf %227, %228 : vector<8x128xf32>
    %230 = math.tanh %229 : vector<8x128xf32>
    %231 = arith.negf %229 : vector<8x128xf32>
    %232 = math.exp %231 : vector<8x128xf32>
    %cst_67 = arith.constant 1.000000e+00 : f32
    %233 = vector.broadcast %cst_67 : f32 to vector<8x128xf32>
    %234 = arith.addf %233, %232 : vector<8x128xf32>
    %235 = arith.divf %233, %234 : vector<8x128xf32>
    %236 = arith.select %21, %230, %235 : vector<8x128xi1>, vector<8x128xf32>
    %237 = vector.extract_strided_slice %236 {offsets = [0, 0], sizes = [8, 32], strides = [1, 1]} : vector<8x128xf32> to vector<8x32xf32>
    %238 = vector.extract_strided_slice %236 {offsets = [0, 32], sizes = [8, 32], strides = [1, 1]} : vector<8x128xf32> to vector<8x32xf32>
    %239 = vector.extract_strided_slice %236 {offsets = [0, 64], sizes = [8, 32], strides = [1, 1]} : vector<8x128xf32> to vector<8x32xf32>
    %240 = vector.extract_strided_slice %236 {offsets = [0, 96], sizes = [8, 32], strides = [1, 1]} : vector<8x128xf32> to vector<8x32xf32>
    %241 = arith.mulf %238, %200 : vector<8x32xf32>
    %242 = arith.mulf %237, %239 : vector<8x32xf32>
    %243 = arith.addf %241, %242 : vector<8x32xf32>
    %244 = math.tanh %243 : vector<8x32xf32>
    %245 = arith.mulf %240, %244 : vector<8x32xf32>
    %cst_68 = arith.constant dense<0.000000e+00> : vector<8x128xf32>
    %246 = tpu.matmul %245, %11, %cst_68 {dimension_numbers = #tpu.dot_dimension_numbers<[1], [0], [0], [1], [0, 0, 1, 1], [], []>} : vector<8x32xf32>, vector<32x128xf32>, vector<8x128xf32> -> vector<8x128xf32>
    %c5_i32 = arith.constant 5 : i32
    %c8_i32_69 = arith.constant 8 : i32
    %247 = arith.muli %c5_i32, %c8_i32_69 : i32
    %248 = tpu.assume_multiple %247, 8 : i32
    %249 = arith.index_cast %248 : i32 to index
    %c0_70 = arith.constant 0 : index
    %250 = vector.load %arg15[%249, %c0_70] : memref<64x128xf32, #tpu.memory_space<vmem>>, vector<8x128xf32>
    %251 = arith.addf %250, %225 : vector<8x128xf32>
    %252 = math.tanh %251 : vector<8x128xf32>
    %253 = arith.negf %251 : vector<8x128xf32>
    %254 = math.exp %253 : vector<8x128xf32>
    %cst_71 = arith.constant 1.000000e+00 : f32
    %255 = vector.broadcast %cst_71 : f32 to vector<8x128xf32>
    %256 = arith.addf %255, %254 : vector<8x128xf32>
    %257 = arith.divf %255, %256 : vector<8x128xf32>
    %258 = arith.select %21, %252, %257 : vector<8x128xi1>, vector<8x128xf32>
    %259 = vector.extract_strided_slice %258 {offsets = [0, 0], sizes = [8, 32], strides = [1, 1]} : vector<8x128xf32> to vector<8x32xf32>
    %260 = vector.extract_strided_slice %258 {offsets = [0, 32], sizes = [8, 32], strides = [1, 1]} : vector<8x128xf32> to vector<8x32xf32>
    %261 = vector.extract_strided_slice %258 {offsets = [0, 64], sizes = [8, 32], strides = [1, 1]} : vector<8x128xf32> to vector<8x32xf32>
    %262 = vector.extract_strided_slice %258 {offsets = [0, 96], sizes = [8, 32], strides = [1, 1]} : vector<8x128xf32> to vector<8x32xf32>
    %263 = arith.mulf %260, %222 : vector<8x32xf32>
    %264 = arith.mulf %259, %261 : vector<8x32xf32>
    %265 = arith.addf %263, %264 : vector<8x32xf32>
    %266 = math.tanh %265 : vector<8x32xf32>
    %267 = arith.mulf %262, %266 : vector<8x32xf32>
    %cst_72 = arith.constant dense<0.000000e+00> : vector<8x128xf32>
    %268 = tpu.matmul %267, %7, %cst_72 {dimension_numbers = #tpu.dot_dimension_numbers<[1], [0], [0], [1], [0, 0, 1, 1], [], []>} : vector<8x32xf32>, vector<32x128xf32>, vector<8x128xf32> -> vector<8x128xf32>
    %cst_73 = arith.constant dense<0.000000e+00> : vector<8x128xf32>
    %269 = tpu.matmul %267, %9, %cst_73 {dimension_numbers = #tpu.dot_dimension_numbers<[1], [0], [0], [1], [0, 0, 1, 1], [], []>} : vector<8x32xf32>, vector<32x128xf32>, vector<8x128xf32> -> vector<8x128xf32>
    %270 = arith.addf %269, %246 : vector<8x128xf32>
    %271 = vector.broadcast %13 : vector<1x128xf32> to vector<8x128xf32>
    %272 = arith.addf %270, %271 : vector<8x128xf32>
    %273 = math.tanh %272 : vector<8x128xf32>
    %274 = arith.negf %272 : vector<8x128xf32>
    %275 = math.exp %274 : vector<8x128xf32>
    %cst_74 = arith.constant 1.000000e+00 : f32
    %276 = vector.broadcast %cst_74 : f32 to vector<8x128xf32>
    %277 = arith.addf %276, %275 : vector<8x128xf32>
    %278 = arith.divf %276, %277 : vector<8x128xf32>
    %279 = arith.select %21, %273, %278 : vector<8x128xi1>, vector<8x128xf32>
    %280 = vector.extract_strided_slice %279 {offsets = [0, 0], sizes = [8, 32], strides = [1, 1]} : vector<8x128xf32> to vector<8x32xf32>
    %281 = vector.extract_strided_slice %279 {offsets = [0, 32], sizes = [8, 32], strides = [1, 1]} : vector<8x128xf32> to vector<8x32xf32>
    %282 = vector.extract_strided_slice %279 {offsets = [0, 64], sizes = [8, 32], strides = [1, 1]} : vector<8x128xf32> to vector<8x32xf32>
    %283 = vector.extract_strided_slice %279 {offsets = [0, 96], sizes = [8, 32], strides = [1, 1]} : vector<8x128xf32> to vector<8x32xf32>
    %284 = arith.mulf %281, %243 : vector<8x32xf32>
    %285 = arith.mulf %280, %282 : vector<8x32xf32>
    %286 = arith.addf %284, %285 : vector<8x32xf32>
    %287 = math.tanh %286 : vector<8x32xf32>
    %288 = arith.mulf %283, %287 : vector<8x32xf32>
    %cst_75 = arith.constant dense<0.000000e+00> : vector<8x128xf32>
    %289 = tpu.matmul %288, %11, %cst_75 {dimension_numbers = #tpu.dot_dimension_numbers<[1], [0], [0], [1], [0, 0, 1, 1], [], []>} : vector<8x32xf32>, vector<32x128xf32>, vector<8x128xf32> -> vector<8x128xf32>
    %c6_i32 = arith.constant 6 : i32
    %c8_i32_76 = arith.constant 8 : i32
    %290 = arith.muli %c6_i32, %c8_i32_76 : i32
    %291 = tpu.assume_multiple %290, 8 : i32
    %292 = arith.index_cast %291 : i32 to index
    %c0_77 = arith.constant 0 : index
    %293 = vector.load %arg15[%292, %c0_77] : memref<64x128xf32, #tpu.memory_space<vmem>>, vector<8x128xf32>
    %294 = arith.addf %293, %268 : vector<8x128xf32>
    %295 = math.tanh %294 : vector<8x128xf32>
    %296 = arith.negf %294 : vector<8x128xf32>
    %297 = math.exp %296 : vector<8x128xf32>
    %cst_78 = arith.constant 1.000000e+00 : f32
    %298 = vector.broadcast %cst_78 : f32 to vector<8x128xf32>
    %299 = arith.addf %298, %297 : vector<8x128xf32>
    %300 = arith.divf %298, %299 : vector<8x128xf32>
    %301 = arith.select %21, %295, %300 : vector<8x128xi1>, vector<8x128xf32>
    %302 = vector.extract_strided_slice %301 {offsets = [0, 0], sizes = [8, 32], strides = [1, 1]} : vector<8x128xf32> to vector<8x32xf32>
    %303 = vector.extract_strided_slice %301 {offsets = [0, 32], sizes = [8, 32], strides = [1, 1]} : vector<8x128xf32> to vector<8x32xf32>
    %304 = vector.extract_strided_slice %301 {offsets = [0, 64], sizes = [8, 32], strides = [1, 1]} : vector<8x128xf32> to vector<8x32xf32>
    %305 = vector.extract_strided_slice %301 {offsets = [0, 96], sizes = [8, 32], strides = [1, 1]} : vector<8x128xf32> to vector<8x32xf32>
    %306 = arith.mulf %303, %265 : vector<8x32xf32>
    %307 = arith.mulf %302, %304 : vector<8x32xf32>
    %308 = arith.addf %306, %307 : vector<8x32xf32>
    %309 = math.tanh %308 : vector<8x32xf32>
    %310 = arith.mulf %305, %309 : vector<8x32xf32>
    %cst_79 = arith.constant dense<0.000000e+00> : vector<8x128xf32>
    %311 = tpu.matmul %310, %7, %cst_79 {dimension_numbers = #tpu.dot_dimension_numbers<[1], [0], [0], [1], [0, 0, 1, 1], [], []>} : vector<8x32xf32>, vector<32x128xf32>, vector<8x128xf32> -> vector<8x128xf32>
    %cst_80 = arith.constant dense<0.000000e+00> : vector<8x128xf32>
    %312 = tpu.matmul %310, %9, %cst_80 {dimension_numbers = #tpu.dot_dimension_numbers<[1], [0], [0], [1], [0, 0, 1, 1], [], []>} : vector<8x32xf32>, vector<32x128xf32>, vector<8x128xf32> -> vector<8x128xf32>
    %313 = arith.addf %312, %289 : vector<8x128xf32>
    %314 = vector.broadcast %13 : vector<1x128xf32> to vector<8x128xf32>
    %315 = arith.addf %313, %314 : vector<8x128xf32>
    %316 = math.tanh %315 : vector<8x128xf32>
    %317 = arith.negf %315 : vector<8x128xf32>
    %318 = math.exp %317 : vector<8x128xf32>
    %cst_81 = arith.constant 1.000000e+00 : f32
    %319 = vector.broadcast %cst_81 : f32 to vector<8x128xf32>
    %320 = arith.addf %319, %318 : vector<8x128xf32>
    %321 = arith.divf %319, %320 : vector<8x128xf32>
    %322 = arith.select %21, %316, %321 : vector<8x128xi1>, vector<8x128xf32>
    %323 = vector.extract_strided_slice %322 {offsets = [0, 0], sizes = [8, 32], strides = [1, 1]} : vector<8x128xf32> to vector<8x32xf32>
    %324 = vector.extract_strided_slice %322 {offsets = [0, 32], sizes = [8, 32], strides = [1, 1]} : vector<8x128xf32> to vector<8x32xf32>
    %325 = vector.extract_strided_slice %322 {offsets = [0, 64], sizes = [8, 32], strides = [1, 1]} : vector<8x128xf32> to vector<8x32xf32>
    %326 = vector.extract_strided_slice %322 {offsets = [0, 96], sizes = [8, 32], strides = [1, 1]} : vector<8x128xf32> to vector<8x32xf32>
    %327 = arith.mulf %324, %286 : vector<8x32xf32>
    %328 = arith.mulf %323, %325 : vector<8x32xf32>
    %329 = arith.addf %327, %328 : vector<8x32xf32>
    %330 = math.tanh %329 : vector<8x32xf32>
    %331 = arith.mulf %326, %330 : vector<8x32xf32>
    %cst_82 = arith.constant dense<0.000000e+00> : vector<8x128xf32>
    %332 = tpu.matmul %331, %11, %cst_82 {dimension_numbers = #tpu.dot_dimension_numbers<[1], [0], [0], [1], [0, 0, 1, 1], [], []>} : vector<8x32xf32>, vector<32x128xf32>, vector<8x128xf32> -> vector<8x128xf32>
    %c7_i32 = arith.constant 7 : i32
    %c8_i32_83 = arith.constant 8 : i32
    %333 = arith.muli %c7_i32, %c8_i32_83 : i32
    %334 = tpu.assume_multiple %333, 8 : i32
    %335 = arith.index_cast %334 : i32 to index
    %c0_84 = arith.constant 0 : index
    %336 = vector.load %arg15[%335, %c0_84] : memref<64x128xf32, #tpu.memory_space<vmem>>, vector<8x128xf32>
    %337 = arith.addf %336, %311 : vector<8x128xf32>
    %338 = math.tanh %337 : vector<8x128xf32>
    %339 = arith.negf %337 : vector<8x128xf32>
    %340 = math.exp %339 : vector<8x128xf32>
    %cst_85 = arith.constant 1.000000e+00 : f32
    %341 = vector.broadcast %cst_85 : f32 to vector<8x128xf32>
    %342 = arith.addf %341, %340 : vector<8x128xf32>
    %343 = arith.divf %341, %342 : vector<8x128xf32>
    %344 = arith.select %21, %338, %343 : vector<8x128xi1>, vector<8x128xf32>
    %345 = vector.extract_strided_slice %344 {offsets = [0, 0], sizes = [8, 32], strides = [1, 1]} : vector<8x128xf32> to vector<8x32xf32>
    %346 = vector.extract_strided_slice %344 {offsets = [0, 32], sizes = [8, 32], strides = [1, 1]} : vector<8x128xf32> to vector<8x32xf32>
    %347 = vector.extract_strided_slice %344 {offsets = [0, 64], sizes = [8, 32], strides = [1, 1]} : vector<8x128xf32> to vector<8x32xf32>
    %348 = vector.extract_strided_slice %344 {offsets = [0, 96], sizes = [8, 32], strides = [1, 1]} : vector<8x128xf32> to vector<8x32xf32>
    %349 = arith.mulf %346, %308 : vector<8x32xf32>
    %350 = arith.mulf %345, %347 : vector<8x32xf32>
    %351 = arith.addf %349, %350 : vector<8x32xf32>
    %352 = math.tanh %351 : vector<8x32xf32>
    %353 = arith.mulf %348, %352 : vector<8x32xf32>
    %cst_86 = arith.constant dense<0.000000e+00> : vector<8x128xf32>
    %354 = tpu.matmul %353, %7, %cst_86 {dimension_numbers = #tpu.dot_dimension_numbers<[1], [0], [0], [1], [0, 0, 1, 1], [], []>} : vector<8x32xf32>, vector<32x128xf32>, vector<8x128xf32> -> vector<8x128xf32>
    %cst_87 = arith.constant dense<0.000000e+00> : vector<8x128xf32>
    %355 = tpu.matmul %353, %9, %cst_87 {dimension_numbers = #tpu.dot_dimension_numbers<[1], [0], [0], [1], [0, 0, 1, 1], [], []>} : vector<8x32xf32>, vector<32x128xf32>, vector<8x128xf32> -> vector<8x128xf32>
    %356 = arith.addf %355, %332 : vector<8x128xf32>
    %357 = vector.broadcast %13 : vector<1x128xf32> to vector<8x128xf32>
    %358 = arith.addf %356, %357 : vector<8x128xf32>
    %359 = math.tanh %358 : vector<8x128xf32>
    %360 = arith.negf %358 : vector<8x128xf32>
    %361 = math.exp %360 : vector<8x128xf32>
    %cst_88 = arith.constant 1.000000e+00 : f32
    %362 = vector.broadcast %cst_88 : f32 to vector<8x128xf32>
    %363 = arith.addf %362, %361 : vector<8x128xf32>
    %364 = arith.divf %362, %363 : vector<8x128xf32>
    %365 = arith.select %21, %359, %364 : vector<8x128xi1>, vector<8x128xf32>
    %366 = vector.extract_strided_slice %365 {offsets = [0, 0], sizes = [8, 32], strides = [1, 1]} : vector<8x128xf32> to vector<8x32xf32>
    %367 = vector.extract_strided_slice %365 {offsets = [0, 32], sizes = [8, 32], strides = [1, 1]} : vector<8x128xf32> to vector<8x32xf32>
    %368 = vector.extract_strided_slice %365 {offsets = [0, 64], sizes = [8, 32], strides = [1, 1]} : vector<8x128xf32> to vector<8x32xf32>
    %369 = vector.extract_strided_slice %365 {offsets = [0, 96], sizes = [8, 32], strides = [1, 1]} : vector<8x128xf32> to vector<8x32xf32>
    %370 = arith.mulf %367, %329 : vector<8x32xf32>
    %371 = arith.mulf %366, %368 : vector<8x32xf32>
    %372 = arith.addf %370, %371 : vector<8x32xf32>
    %373 = math.tanh %372 : vector<8x32xf32>
    %374 = arith.mulf %369, %373 : vector<8x32xf32>
    %cst_89 = arith.constant dense<0.000000e+00> : vector<8x128xf32>
    %375 = tpu.matmul %374, %11, %cst_89 {dimension_numbers = #tpu.dot_dimension_numbers<[1], [0], [0], [1], [0, 0, 1, 1], [], []>} : vector<8x32xf32>, vector<32x128xf32>, vector<8x128xf32> -> vector<8x128xf32>
    %c8_i32_90 = arith.constant 8 : i32
    %c0_91 = arith.constant 0 : index
    %c0_92 = arith.constant 0 : index
    %c0_93 = arith.constant 0 : index
    %376 = vector.load %arg13[%c0_91, %c0_92, %c0_93] : memref<2x8x32xf32, #tpu.memory_space<vmem>>, vector<1x8x32xf32>
    %377 = vector.shape_cast %376 : vector<1x8x32xf32> to vector<8x32xf32>
    %378 = vector.shape_cast %353 : vector<8x32xf32> to vector<1x8x32xf32>
    tpu.vector_store %arg13[%c0_91, %c0_92, %c0_93], %378 {strides = array<i32>} : memref<2x8x32xf32, #tpu.memory_space<vmem>>, vector<1x8x32xf32>,
    %c0_94 = arith.constant 0 : index
    %c0_95 = arith.constant 0 : index
    %c0_96 = arith.constant 0 : index
    %379 = vector.load %arg14[%c0_94, %c0_95, %c0_96] : memref<2x8x32xf32, #tpu.memory_space<vmem>>, vector<1x8x32xf32>
    %380 = vector.shape_cast %379 : vector<1x8x32xf32> to vector<8x32xf32>
    %381 = vector.shape_cast %351 : vector<8x32xf32> to vector<1x8x32xf32>
    tpu.vector_store %arg14[%c0_94, %c0_95, %c0_96], %381 {strides = array<i32>} : memref<2x8x32xf32, #tpu.memory_space<vmem>>, vector<1x8x32xf32>,
    %c1_97 = arith.constant 1 : index
    %c0_98 = arith.constant 0 : index
    %c0_99 = arith.constant 0 : index
    %382 = vector.load %arg13[%c1_97, %c0_98, %c0_99] : memref<2x8x32xf32, #tpu.memory_space<vmem>>, vector<1x8x32xf32>
    %383 = vector.shape_cast %382 : vector<1x8x32xf32> to vector<8x32xf32>
    %384 = vector.shape_cast %374 : vector<8x32xf32> to vector<1x8x32xf32>
    tpu.vector_store %arg13[%c1_97, %c0_98, %c0_99], %384 {strides = array<i32>} : memref<2x8x32xf32, #tpu.memory_space<vmem>>, vector<1x8x32xf32>,
    %c1_100 = arith.constant 1 : index
    %c0_101 = arith.constant 0 : index
    %c0_102 = arith.constant 0 : index
    %385 = vector.load %arg14[%c1_100, %c0_101, %c0_102] : memref<2x8x32xf32, #tpu.memory_space<vmem>>, vector<1x8x32xf32>
    %386 = vector.shape_cast %385 : vector<1x8x32xf32> to vector<8x32xf32>
    %387 = vector.shape_cast %372 : vector<8x32xf32> to vector<1x8x32xf32>
    tpu.vector_store %arg14[%c1_100, %c0_101, %c0_102], %387 {strides = array<i32>} : memref<2x8x32xf32, #tpu.memory_space<vmem>>, vector<1x8x32xf32>,
    %cst_103 = arith.constant 0.000000e+00 : f32
    %388 = vector.broadcast %cst_103 : f32 to vector<8x32xf32>
    %389 = arith.maximumf %374, %388 : vector<8x32xf32>
    %cst_104 = arith.constant dense<0.000000e+00> : vector<8x4xf32>
    %390 = tpu.matmul %389, %14, %cst_104 {dimension_numbers = #tpu.dot_dimension_numbers<[1], [0], [0], [1], [0, 0, 1, 1], [], []>} : vector<8x32xf32>, vector<32x4xf32>, vector<8x4xf32> -> vector<8x4xf32>
    %391 = vector.broadcast %15 : vector<1x4xf32> to vector<8x4xf32>
    %392 = arith.addf %390, %391 : vector<8x4xf32>
    %c0_105 = arith.constant 0 : index
    %c0_106 = arith.constant 0 : index
    %393 = vector.load %arg12[%c0_105, %c0_106] : memref<8x4xf32, #tpu.memory_space<vmem>>, vector<8x4xf32>
    tpu.vector_store %arg12[%c0_105, %c0_106], %392 {strides = array<i32>} : memref<8x4xf32, #tpu.memory_space<vmem>>, vector<8x4xf32>,
    return
  }
  func.func @transform_0(%arg0: i32) -> (i32, i32) {
    %c0_i32 = arith.constant 0 : i32
    %c0_i32_0 = arith.constant 0 : i32
    %c0_i32_1 = arith.constant 0 : i32
    return %c0_i32, %c0_i32_0 : i32, i32
  }
  func.func @transform_1(%arg0: i32) -> (i32, i32, i32) {
    %c0_i32 = arith.constant 0 : i32
    %c0_i32_0 = arith.constant 0 : i32
    %c0_i32_1 = arith.constant 0 : i32
    %c0_i32_2 = arith.constant 0 : i32
    return %c0_i32, %c0_i32_0, %c0_i32_1 : i32, i32, i32
  }
  func.func @transform_2(%arg0: i32) -> (i32, i32, i32) {
    %c0_i32 = arith.constant 0 : i32
    %c0_i32_0 = arith.constant 0 : i32
    %c0_i32_1 = arith.constant 0 : i32
    %c0_i32_2 = arith.constant 0 : i32
    return %c0_i32, %c0_i32_0, %c0_i32_1 : i32, i32, i32
  }
  func.func @transform_3(%arg0: i32) -> (i32, i32) {
    %c0_i32 = arith.constant 0 : i32
    %c0_i32_0 = arith.constant 0 : i32
    %c0_i32_1 = arith.constant 0 : i32
    return %c0_i32, %c0_i32_0 : i32, i32
  }
  func.func @transform_4(%arg0: i32) -> (i32, i32) {
    %c0_i32 = arith.constant 0 : i32
    %c0_i32_0 = arith.constant 0 : i32
    %c0_i32_1 = arith.constant 0 : i32
    return %c0_i32, %c0_i32_0 : i32, i32
  }
  func.func @transform_5(%arg0: i32) -> (i32, i32) {
    %c0_i32 = arith.constant 0 : i32
    %c0_i32_0 = arith.constant 0 : i32
    %c0_i32_1 = arith.constant 0 : i32
    return %c0_i32, %c0_i32_0 : i32, i32
  }
  func.func @transform_6(%arg0: i32) -> (i32, i32, i32) {
    %c0_i32 = arith.constant 0 : i32
    %c0_i32_0 = arith.constant 0 : i32
    %c0_i32_1 = arith.constant 0 : i32
    %c0_i32_2 = arith.constant 0 : i32
    return %c0_i32, %c0_i32_0, %c0_i32_1 : i32, i32, i32
  }
  func.func @transform_7(%arg0: i32) -> (i32, i32, i32) {
    %c0_i32 = arith.constant 0 : i32
    %c0_i32_0 = arith.constant 0 : i32
    %c0_i32_1 = arith.constant 0 : i32
    %c0_i32_2 = arith.constant 0 : i32
    return %c0_i32, %c0_i32_0, %c0_i32_1 : i32, i32, i32
  }
  func.func @transform_8(%arg0: i32) -> (i32, i32, i32) {
    %c0_i32 = arith.constant 0 : i32
    %c0_i32_0 = arith.constant 0 : i32
    %c0_i32_1 = arith.constant 0 : i32
    %c0_i32_2 = arith.constant 0 : i32
    return %c0_i32, %c0_i32_0, %c0_i32_1 : i32, i32, i32
  }
  func.func @transform_9(%arg0: i32) -> (i32, i32) {
    %c0_i32 = arith.constant 0 : i32
    %c0_i32_0 = arith.constant 0 : i32
    %c0_i32_1 = arith.constant 0 : i32
    return %c0_i32, %c0_i32_0 : i32, i32
  }
  func.func @transform_10(%arg0: i32) -> (i32, i32) {
    %c0_i32 = arith.constant 0 : i32
    %c0_i32_0 = arith.constant 0 : i32
    %c0_i32_1 = arith.constant 0 : i32
    return %c0_i32, %c0_i32_0 : i32, i32
  }
  func.func @transform_11(%arg0: i32) -> (i32, i32) {
    %c0_i32 = arith.constant 0 : i32
    %c0_i32_0 = arith.constant 0 : i32
    %c0_i32_1 = arith.constant 0 : i32
    return %c0_i32, %c0_i32_0 : i32, i32
  }
  func.func @transform_12(%arg0: i32) -> (i32, i32, i32) {
    %c0_i32 = arith.constant 0 : i32
    %c0_i32_0 = arith.constant 0 : i32
    %c0_i32_1 = arith.constant 0 : i32
    %c0_i32_2 = arith.constant 0 : i32
    return %c0_i32, %c0_i32_0, %c0_i32_1 : i32, i32, i32
  }
  func.func @transform_13(%arg0: i32) -> (i32, i32, i32) {
    %c0_i32 = arith.constant 0 : i32
    %c0_i32_0 = arith.constant 0 : i32
    %c0_i32_1 = arith.constant 0 : i32
    %c0_i32_2 = arith.constant 0 : i32
    return %c0_i32, %c0_i32_0, %c0_i32_1 : i32, i32, i32
  }
}

</mosaic_0001>

<llo_original>
// kernel: lstmnet_forward.1
$region0: #{lstmnet_forward.1}
  #allocation0 [shape = 'u32[]', space=smem, size = 0x4, offset = 0x4, fixed_abs, tag = 'smem constant byte address 0x4 - core index']
  #allocation1 [shape = 'u32[72,128]{1,0:T(1,128)}', space=vmem, size = 0x9000, scoped, tag = 'internal scratch']
  #allocation2 [shape = 'f32[64,128]{1,0:T(8,128)}', space=vmem, size = 0x8000, scoped, tag = 'scratch operand']
  %s0 = inlined_call_operand.vmem [shape: f32[64,16], index: 0, kind: input, shape index: {}]
  %s1 = inlined_call_operand.vmem [shape: f32[2,8,32], index: 1, kind: input, shape index: {}]
  %s2 = inlined_call_operand.vmem [shape: f32[2,8,32], index: 2, kind: input, shape index: {}]
  %s3 = inlined_call_operand.vmem [shape: f32[16,128], index: 3, kind: input, shape index: {}]
  %s4 = inlined_call_operand.vmem [shape: f32[1,128], index: 4, kind: input, shape index: {}]
  %s5 = inlined_call_operand.vmem [shape: f32[32,128], index: 5, kind: input, shape index: {}]
  %s6 = inlined_call_operand.vmem [shape: f32[1,32,128], index: 6, kind: input, shape index: {}]
  %s7 = inlined_call_operand.vmem [shape: f32[1,32,128], index: 7, kind: input, shape index: {}]
  %s8 = inlined_call_operand.vmem [shape: f32[1,1,128], index: 8, kind: input, shape index: {}]
  %s9 = inlined_call_operand.vmem [shape: f32[32,4], index: 9, kind: input, shape index: {}]
  %s10 = inlined_call_operand.vmem [shape: f32[1,4], index: 10, kind: input, shape index: {}]
  %s11 = inlined_call_operand.vmem [shape: f32[8,4], index: 11, kind: output, shape index: {0}]
  %s12 = inlined_call_operand.vmem [shape: f32[2,8,32], index: 12, kind: output, shape index: {1}]
  %s13 = inlined_call_operand.vmem [shape: f32[2,8,32], index: 13, kind: output, shape index: {2}]
  %14 = xla_tuple %s11, %s12, %s13
  %s15 = sld [smem:[#allocation0]]
  $region70: #{lstmnet_forward.1} parent=0
    _
  %s17 = ssub.s32 1, %s15
  %s18 = scalar_select 0, %s17, %s15
  // Predicated region
  $region2: #{lstmnet_forward.1} parent=0 // pred_check
    _
  $region3: #{lstmnet_forward.1} parent=0 // pred_check_branch
    %20 = sbr.rel (0) target = $region5
  $region4: #{lstmnet_forward.1} parent=0 // pred_region
    _
  $region5: #{lstmnet_forward.1} parent=0 // pred_fallthru
    _
  // Predicated region
  $region6: #{lstmnet_forward.1} parent=0 // pred_check
    _
  $region7: #{lstmnet_forward.1} parent=0 // pred_check_branch
    %22 = sbr.rel (0) target = $region9
  $region8: #{lstmnet_forward.1} parent=0 // pred_region
    _
  $region9: #{lstmnet_forward.1} parent=0 // pred_fallthru
    _
  // Predicated region
  $region10: #{lstmnet_forward.1} parent=0 // pred_check
    _
  $region11: #{lstmnet_forward.1} parent=0 // pred_check_branch
    %24 = sbr.rel (0) target = $region13
  $region12: #{lstmnet_forward.1} parent=0 // pred_region
    _
  $region13: #{lstmnet_forward.1} parent=0 // pred_fallthru
    _
  // Predicated region
  $region14: #{lstmnet_forward.1} parent=0 // pred_check
    _
  $region15: #{lstmnet_forward.1} parent=0 // pred_check_branch
    %26 = sbr.rel (0) target = $region17
  $region16: #{lstmnet_forward.1} parent=0 // pred_region
    _
  $region17: #{lstmnet_forward.1} parent=0 // pred_fallthru
    _
  // Predicated region
  $region18: #{lstmnet_forward.1} parent=0 // pred_check
    _
  $region19: #{lstmnet_forward.1} parent=0 // pred_check_branch
    %28 = sbr.rel (0) target = $region21
  $region20: #{lstmnet_forward.1} parent=0 // pred_region
    _
  $region21: #{lstmnet_forward.1} parent=0 // pred_fallthru
    _
  // Predicated region
  $region22: #{lstmnet_forward.1} parent=0 // pred_check
    _
  $region23: #{lstmnet_forward.1} parent=0 // pred_check_branch
    %30 = sbr.rel (0) target = $region25
  $region24: #{lstmnet_forward.1} parent=0 // pred_region
    _
  $region25: #{lstmnet_forward.1} parent=0 // pred_fallthru
    _
  // Predicated region
  $region26: #{lstmnet_forward.1} parent=0 // pred_check
    _
  $region27: #{lstmnet_forward.1} parent=0 // pred_check_branch
    %32 = sbr.rel (0) target = $region29
  $region28: #{lstmnet_forward.1} parent=0 // pred_region
    _
  $region29: #{lstmnet_forward.1} parent=0 // pred_fallthru
    _
  // Predicated region
  $region30: #{lstmnet_forward.1} parent=0 // pred_check
    _
  $region31: #{lstmnet_forward.1} parent=0 // pred_check_branch
    %34 = sbr.rel (0) target = $region33
  $region32: #{lstmnet_forward.1} parent=0 // pred_region
    _
  $region33: #{lstmnet_forward.1} parent=0 // pred_fallthru
    _
  // Predicated region
  $region34: #{lstmnet_forward.1} parent=0 // pred_check
    _
  $region35: #{lstmnet_forward.1} parent=0 // pred_check_branch
    %36 = sbr.rel (0) target = $region37
  $region36: #{lstmnet_forward.1} parent=0 // pred_region
    _
  $region37: #{lstmnet_forward.1} parent=0 // pred_fallthru
    _
  // Predicated region
  $region38: #{lstmnet_forward.1} parent=0 // pred_check
    _
  $region39: #{lstmnet_forward.1} parent=0 // pred_check_branch
    %38 = sbr.rel (0) target = $region41
  $region40: #{lstmnet_forward.1} parent=0 // pred_region
    _
  $region41: #{lstmnet_forward.1} parent=0 // pred_fallthru
    _
  // Predicated region
  $region42: #{lstmnet_forward.1} parent=0 // pred_check
    _
  $region43: #{lstmnet_forward.1} parent=0 // pred_check_branch
    %40 = sbr.rel (0) target = $region45
  $region44: #{lstmnet_forward.1} parent=0 // pred_region
    _
  $region45: #{lstmnet_forward.1} parent=0 // pred_fallthru
    _
  %v41 = vld [vmem:[%s0] sm:$0xff]
  %v42 = vld [vmem:[%s0 + $0x8] sm:$0xff]
  %v43 = vld [vmem:[%s0 + $0x10] sm:$0xff]
  %v44 = vld [vmem:[%s0 + $0x18] sm:$0xff]
  %v45 = vld [vmem:[%s0 + $0x20] sm:$0xff]
  %v46 = vld [vmem:[%s0 + $0x28] sm:$0xff]
  %v47 = vld [vmem:[%s0 + $0x30] sm:$0xff]
  %v48 = vld [vmem:[%s0 + $0x38] sm:$0xff]
  %v49 = vld [vmem:[%s3] sm:$0xff]
  %v50 = vld [vmem:[%s3 + $0x8] sm:$0xff]
  %v51 = vld [vmem:[%s4] sm:$0x1]
  %v53 = vperm.slane %v51, 0
  %vm55 = vcmask 130048
  %v57 = vsel %vm55, %v41, 0
  %v60 = vsel %vm55, %v42, 0
  %v63 = vsel %vm55, %v43, 0
  %v66 = vsel %vm55, %v44, 0
  %v69 = vsel %vm55, %v45, 0
  %v72 = vsel %vm55, %v46, 0
  %v75 = vsel %vm55, %v47, 0
  %v78 = vsel %vm55, %v48, 0
  %80 = vmatpush.msra.mxu0 0.0
  %81 = vmatpush.msra.mxu0 0.0
  %82 = vmatpush.msra.mxu0 0.0
  %83 = vmatpush.msra.mxu0 0.0
  %84 = vmatpush.msra.mxu0 0.0
  %85 = vmatpush.msra.mxu0 0.0
  %86 = vmatpush.msra.mxu0 0.0
  %87 = vmatpush.msra.mxu0 0.0
  %88 = vmatpush.msra.mxu0 0.0
  %89 = vmatpush.msra.mxu0 0.0
  %90 = vmatpush.msra.mxu0 0.0
  %91 = vmatpush.msra.mxu0 0.0
  %92 = vmatpush.msra.mxu0 0.0
  %93 = vmatpush.msra.mxu0 0.0
  %94 = vmatpush.msra.mxu0 %v50
  %95 = vmatpush.msra.mxu0 %v49
  %96 = vmatmul.f32.gmra.mxu0 %v57
  %v97 = vpop.f32.mrf.mxu0
  %v98 = vadd.f32 %v53, %v97
  %99 = vmatmul.f32.gmra.mxu0 %v60
  %v100 = vpop.f32.mrf.mxu0
  %v101 = vadd.f32 %v53, %v100
  %102 = vmatmul.f32.gmra.mxu0 %v63
  %v103 = vpop.f32.mrf.mxu0
  %v104 = vadd.f32 %v53, %v103
  %105 = vmatmul.f32.gmra.mxu0 %v66
  %v106 = vpop.f32.mrf.mxu0
  %v107 = vadd.f32 %v53, %v106
  %108 = vmatmul.f32.gmra.mxu0 %v69
  %v109 = vpop.f32.mrf.mxu0
  %v110 = vadd.f32 %v53, %v109
  %111 = vmatmul.f32.gmra.mxu0 %v72
  %v112 = vpop.f32.mrf.mxu0
  %v113 = vadd.f32 %v53, %v112
  %114 = vmatmul.f32.gmra.mxu0 %v75
  %v115 = vpop.f32.mrf.mxu0
  %v116 = vadd.f32 %v53, %v115
  %117 = vmatmul.f32.gmra.mxu0 %v78
  %v118 = vpop.f32.mrf.mxu0
  %v119 = vadd.f32 %v53, %v118
  %120 = vdwg.mxu0
  %121 = vst [vmem:[#allocation2] sm:$0xff] %v98
  %122 = vst [vmem:[#allocation2 + $0x8] sm:$0xff] %v101
  %123 = vst [vmem:[#allocation2 + $0x10] sm:$0xff] %v104
  %124 = vst [vmem:[#allocation2 + $0x18] sm:$0xff] %v107
  %125 = vst [vmem:[#allocation2 + $0x20] sm:$0xff] %v110
  %126 = vst [vmem:[#allocation2 + $0x28] sm:$0xff] %v113
  %127 = vst [vmem:[#allocation2 + $0x30] sm:$0xff] %v116
  %128 = vst [vmem:[#allocation2 + $0x38] sm:$0xff] %v119
  %v129 = vld [vmem:[%s5] sm:$0xff]
  %v130 = vld [vmem:[%s5 + $0x8] sm:$0xff]
  %v131 = vld [vmem:[%s5 + $0x10] sm:$0xff]
  %v132 = vld [vmem:[%s5 + $0x18] sm:$0xff]
  %v133 = vld [vmem:[%s6] sm:$0xff]
  %v134 = vld [vmem:[%s6 + $0x8] sm:$0xff]
  %v135 = vld [vmem:[%s6 + $0x10] sm:$0xff]
  %v136 = vld [vmem:[%s6 + $0x18] sm:$0xff]
  %v137 = vld [vmem:[%s7] sm:$0xff]
  %v138 = vld [vmem:[%s7 + $0x8] sm:$0xff]
  %v139 = vld [vmem:[%s7 + $0x10] sm:$0xff]
  %v140 = vld [vmem:[%s7 + $0x18] sm:$0xff]
  %v141 = vld [vmem:[%s8] sm:$0x1]
  %v142 = vld [vmem:[%s9] sm:$0xff]
  %v143 = vld [vmem:[%s9 + $0x8] sm:$0xff]
  %v144 = vld [vmem:[%s9 + $0x10] sm:$0xff]
  %v145 = vld [vmem:[%s9 + $0x18] sm:$0xff]
  %v146 = vld [vmem:[%s10] sm:$0x1]
  %v147 = vlaneseq
  %v148 = vand.u32 %v147, 127
  %vm149 = vcmp.ge.s32.totalorder %v148, 64
  %vm150 = vcmp.lt.s32.totalorder %v148, 96
  %vm151 = vmand %vm149, %vm150
  %v152 = vld [vmem:[%s1] sm:$0xff]
  %s153 = scalar_lea.vmem %s1, 8
  %v154 = vld [vmem:[%s153] sm:$0xff]
  %v155 = vld [vmem:[%s2] sm:$0xff]
  %s156 = scalar_lea.vmem %s2, 8
  %v157 = vld [vmem:[%s156] sm:$0xff]
  %vm158 = vcmask 261120
  %v160 = vsel %vm158, %v152, 0
  %162 = vmatpush.msra.mxu0 0.0
  %163 = vmatpush.msra.mxu0 0.0
  %164 = vmatpush.msra.mxu0 0.0
  %165 = vmatpush.msra.mxu0 0.0
  %166 = vmatpush.msra.mxu0 0.0
  %167 = vmatpush.msra.mxu0 0.0
  %168 = vmatpush.msra.mxu0 0.0
  %169 = vmatpush.msra.mxu0 0.0
  %170 = vmatpush.msra.mxu0 0.0
  %171 = vmatpush.msra.mxu0 0.0
  %172 = vmatpush.msra.mxu0 0.0
  %173 = vmatpush.msra.mxu0 0.0
  %174 = vmatpush.msra.mxu0 %v132
  %175 = vmatpush.msra.mxu0 %v131
  %176 = vmatpush.msra.mxu0 %v130
  %177 = vmatpush.msra.mxu0 %v129
  %178 = vmatmul.f32.gmra.mxu0 %v160
  %v179 = vpop.f32.mrf.mxu0
  %v180 = vadd.f32 0.0, %v179
  %181 = vdwg.mxu0
  %v183 = vsel %vm158, %v154, 0
  %185 = vmatpush.msra.mxu0 0.0
  %186 = vmatpush.msra.mxu0 0.0
  %187 = vmatpush.msra.mxu0 0.0
  %188 = vmatpush.msra.mxu0 0.0
  %189 = vmatpush.msra.mxu0 0.0
  %190 = vmatpush.msra.mxu0 0.0
  %191 = vmatpush.msra.mxu0 0.0
  %192 = vmatpush.msra.mxu0 0.0
  %193 = vmatpush.msra.mxu0 0.0
  %194 = vmatpush.msra.mxu0 0.0
  %195 = vmatpush.msra.mxu0 0.0
  %196 = vmatpush.msra.mxu0 0.0
  %197 = vmatpush.msra.mxu0 %v140
  %198 = vmatpush.msra.mxu0 %v139
  %199 = vmatpush.msra.mxu0 %v138
  %200 = vmatpush.msra.mxu0 %v137
  %201 = vmatmul.f32.gmra.mxu0 %v183
  %v202 = vpop.f32.mrf.mxu0
  %v203 = vadd.f32 0.0, %v202
  %204 = vdwg.mxu0
  %v205 = vld [vmem:[#allocation2] sm:$0xff]
  %v206 = vadd.f32 %v205, %v180
  %v207 = vtanh.pop %v206
  %v208 = vxor.u32 %v206, 2147483648
  %v209 = vmul.f32 %v208, 1.442695
  %v210 = vpow.pop %v209
  %v211 = vadd.f32 %v210, 1.0
  %v212 = vrcp.pop %v211
  %v213 = vmul.f32 %v211, %v212
  %v214 = vsub.f32 1.0, %v213
  %v215 = vmul.f32 %v212, %v214
  %v216 = vadd.f32 %v212, %v215
  %vm217 = vweird.f32 %v211
  %vm218 = vweird.f32 %v212
  %vm219 = vmor %vm217, %vm218
  %v220 = vsel %vm219, %v212, %v216
  %v221 = vand.u32 2147483647, %v211
  %vm222 = vcmp.eq.f32.partialorder %v221, 8.507059e+37
  %v223 = vand.u32 %v211, 2147483648
  %v224 = vor.u32 1.1754944e-38, %v223
  %v225 = vsel %vm222, %v224, %v220
  %v226 = vmul.f32 1.0, %v225
  %v227 = vsel %vm151, %v207, %v226
  %229 = vrot.lane.b32.xlu0 %v155, 32
  %v230 = vpop.permute.xlu0 %229
  %v232 = vmul.f32 %v227, %v230
  %234 = vrot.lane.b32.xlu0 %v227, 64
  %v235 = vpop.permute.xlu0 %234
  %v237 = vmul.f32 %v227, %v235
  %239 = vrot.lane.b32.xlu0 %v237, 32
  %v240 = vpop.permute.xlu0 %239
  %v242 = vadd.f32 %v232, %v240
  %v243 = vtanh.pop %v242
  %245 = vrot.lane.b32.xlu0 %v243, 64
  %v246 = vpop.permute.xlu0 %245
  %v248 = vmul.f32 %v227, %v246
  %250 = vrot.lane.b32.xlu0 %v248, 32
  %v251 = vpop.permute.xlu0 %250
  %v252 = vsel %vm158, %v251, 0
  %254 = vmatpush.msra.mxu0 0.0
  %255 = vmatpush.msra.mxu0 0.0
  %256 = vmatpush.msra.mxu0 0.0
  %257 = vmatpush.msra.mxu0 0.0
  %258 = vmatpush.msra.mxu0 0.0
  %259 = vmatpush.msra.mxu0 0.0
  %260 = vmatpush.msra.mxu0 0.0
  %261 = vmatpush.msra.mxu0 0.0
  %262 = vmatpush.msra.mxu0 0.0
  %263 = vmatpush.msra.mxu0 0.0
  %264 = vmatpush.msra.mxu0 0.0
  %265 = vmatpush.msra.mxu0 0.0
  %266 = vmatpush.msra.mxu0 %v132
  %267 = vmatpush.msra.mxu0 %v131
  %268 = vmatpush.msra.mxu0 %v130
  %269 = vmatpush.msra.mxu0 %v129
  %270 = vmatmul.f32.gmra.mxu0 %v252
  %v271 = vpop.f32.mrf.mxu0
  %v272 = vadd.f32 0.0, %v271
  %273 = vdwg.mxu0
  %274 = vmatpush.msra.mxu0 0.0
  %275 = vmatpush.msra.mxu0 0.0
  %276 = vmatpush.msra.mxu0 0.0
  %277 = vmatpush.msra.mxu0 0.0
  %278 = vmatpush.msra.mxu0 0.0
  %279 = vmatpush.msra.mxu0 0.0
  %280 = vmatpush.msra.mxu0 0.0
  %281 = vmatpush.msra.mxu0 0.0
  %282 = vmatpush.msra.mxu0 0.0
  %283 = vmatpush.msra.mxu0 0.0
  %284 = vmatpush.msra.mxu0 0.0
  %285 = vmatpush.msra.mxu0 0.0
  %286 = vmatpush.msra.mxu0 %v136
  %287 = vmatpush.msra.mxu0 %v135
  %288 = vmatpush.msra.mxu0 %v134
  %289 = vmatpush.msra.mxu0 %v133
  %290 = vmatmul.f32.gmra.mxu0 %v252
  %v291 = vpop.f32.mrf.mxu0
  %v292 = vadd.f32 %v203, %v291
  %293 = vdwg.mxu0
  %v295 = vperm.slane %v141, 0
  %v297 = vadd.f32 %v292, %v295
  %v298 = vtanh.pop %v297
  %v299 = vxor.u32 %v297, 2147483648
  %v300 = vmul.f32 %v299, 1.442695
  %v301 = vpow.pop %v300
  %v302 = vadd.f32 %v301, 1.0
  %v303 = vrcp.pop %v302
  %v304 = vmul.f32 %v302, %v303
  %v305 = vsub.f32 1.0, %v304
  %v306 = vmul.f32 %v303, %v305
  %v307 = vadd.f32 %v303, %v306
  %vm308 = vweird.f32 %v302
  %vm309 = vweird.f32 %v303
  %vm310 = vmor %vm308, %vm309
  %v311 = vsel %vm310, %v303, %v307
  %v312 = vand.u32 2147483647, %v302
  %vm313 = vcmp.eq.f32.partialorder %v312, 8.507059e+37
  %v314 = vand.u32 %v302, 2147483648
  %v315 = vor.u32 1.1754944e-38, %v314
  %v316 = vsel %vm313, %v315, %v311
  %v317 = vmul.f32 1.0, %v316
  %v318 = vsel %vm151, %v298, %v317
  %320 = vrot.lane.b32.xlu0 %v157, 32
  %v321 = vpop.permute.xlu0 %320
  %v323 = vmul.f32 %v318, %v321
  %325 = vrot.lane.b32.xlu0 %v318, 64
  %v326 = vpop.permute.xlu0 %325
  %v328 = vmul.f32 %v318, %v326
  %330 = vrot.lane.b32.xlu0 %v328, 32
  %v331 = vpop.permute.xlu0 %330
  %v333 = vadd.f32 %v323, %v331
  %v334 = vtanh.pop %v333
  %336 = vrot.lane.b32.xlu0 %v334, 64
  %v337 = vpop.permute.xlu0 %336
  %v339 = vmul.f32 %v318, %v337
  %341 = vrot.lane.b32.xlu0 %v339, 32
  %v342 = vpop.permute.xlu0 %341
  %v343 = vsel %vm158, %v342, 0
  %345 = vmatpush.msra.mxu0 0.0
  %346 = vmatpush.msra.mxu0 0.0
  %347 = vmatpush.msra.mxu0 0.0
  %348 = vmatpush.msra.mxu0 0.0
  %349 = vmatpush.msra.mxu0 0.0
  %350 = vmatpush.msra.mxu0 0.0
  %351 = vmatpush.msra.mxu0 0.0
  %352 = vmatpush.msra.mxu0 0.0
  %353 = vmatpush.msra.mxu0 0.0
  %354 = vmatpush.msra.mxu0 0.0
  %355 = vmatpush.msra.mxu0 0.0
  %356 = vmatpush.msra.mxu0 0.0
  %357 = vmatpush.msra.mxu0 %v140
  %358 = vmatpush.msra.mxu0 %v139
  %359 = vmatpush.msra.mxu0 %v138
  %360 = vmatpush.msra.mxu0 %v137
  %361 = vmatmul.f32.gmra.mxu0 %v343
  %v362 = vpop.f32.mrf.mxu0
  %v363 = vadd.f32 0.0, %v362
  %364 = vdwg.mxu0
  %s365 = scalar_lea.vmem [#allocation2], 8
  %v366 = vld [vmem:[%s365] sm:$0xff]
  %v367 = vadd.f32 %v366, %v272
  %v368 = vtanh.pop %v367
  %v369 = vxor.u32 %v367, 2147483648
  %v370 = vmul.f32 %v369, 1.442695
  %v371 = vpow.pop %v370
  %v372 = vadd.f32 %v371, 1.0
  %v373 = vrcp.pop %v372
  %v374 = vmul.f32 %v372, %v373
  %v375 = vsub.f32 1.0, %v374
  %v376 = vmul.f32 %v373, %v375
  %v377 = vadd.f32 %v373, %v376
  %vm378 = vweird.f32 %v372
  %vm379 = vweird.f32 %v373
  %vm380 = vmor %vm378, %vm379
  %v381 = vsel %vm380, %v373, %v377
  %v382 = vand.u32 2147483647, %v372
  %vm383 = vcmp.eq.f32.partialorder %v382, 8.507059e+37
  %v384 = vand.u32 %v372, 2147483648
  %v385 = vor.u32 1.1754944e-38, %v384
  %v386 = vsel %vm383, %v385, %v381
  %v387 = vmul.f32 1.0, %v386
  %v388 = vsel %vm151, %v368, %v387
  %v389 = vmul.f32 %v388, %v242
  %391 = vrot.lane.b32.xlu0 %v388, 64
  %v392 = vpop.permute.xlu0 %391
  %v394 = vmul.f32 %v388, %v392
  %396 = vrot.lane.b32.xlu0 %v394, 32
  %v397 = vpop.permute.xlu0 %396
  %v399 = vadd.f32 %v389, %v397
  %v400 = vtanh.pop %v399
  %402 = vrot.lane.b32.xlu0 %v400, 64
  %v403 = vpop.permute.xlu0 %402
  %v405 = vmul.f32 %v388, %v403
  %407 = vrot.lane.b32.xlu0 %v405, 32
  %v408 = vpop.permute.xlu0 %407
  %v409 = vsel %vm158, %v408, 0
  %411 = vmatpush.msra.mxu0 0.0
  %412 = vmatpush.msra.mxu0 0.0
  %413 = vmatpush.msra.mxu0 0.0
  %414 = vmatpush.msra.mxu0 0.0
  %415 = vmatpush.msra.mxu0 0.0
  %416 = vmatpush.msra.mxu0 0.0
  %417 = vmatpush.msra.mxu0 0.0
  %418 = vmatpush.msra.mxu0 0.0
  %419 = vmatpush.msra.mxu0 0.0
  %420 = vmatpush.msra.mxu0 0.0
  %421 = vmatpush.msra.mxu0 0.0
  %422 = vmatpush.msra.mxu0 0.0
  %423 = vmatpush.msra.mxu0 %v132
  %424 = vmatpush.msra.mxu0 %v131
  %425 = vmatpush.msra.mxu0 %v130
  %426 = vmatpush.msra.mxu0 %v129
  %427 = vmatmul.f32.gmra.mxu0 %v409
  %v428 = vpop.f32.mrf.mxu0
  %v429 = vadd.f32 0.0, %v428
  %430 = vdwg.mxu0
  %431 = vmatpush.msra.mxu0 0.0
  %432 = vmatpush.msra.mxu0 0.0
  %433 = vmatpush.msra.mxu0 0.0
  %434 = vmatpush.msra.mxu0 0.0
  %435 = vmatpush.msra.mxu0 0.0
  %436 = vmatpush.msra.mxu0 0.0
  %437 = vmatpush.msra.mxu0 0.0
  %438 = vmatpush.msra.mxu0 0.0
  %439 = vmatpush.msra.mxu0 0.0
  %440 = vmatpush.msra.mxu0 0.0
  %441 = vmatpush.msra.mxu0 0.0
  %442 = vmatpush.msra.mxu0 0.0
  %443 = vmatpush.msra.mxu0 %v136
  %444 = vmatpush.msra.mxu0 %v135
  %445 = vmatpush.msra.mxu0 %v134
  %446 = vmatpush.msra.mxu0 %v133
  %447 = vmatmul.f32.gmra.mxu0 %v409
  %v448 = vpop.f32.mrf.mxu0
  %v449 = vadd.f32 %v363, %v448
  %450 = vdwg.mxu0
  %v451 = vadd.f32 %v449, %v295
  %v452 = vtanh.pop %v451
  %v453 = vxor.u32 %v451, 2147483648
  %v454 = vmul.f32 %v453, 1.442695
  %v455 = vpow.pop %v454
  %v456 = vadd.f32 %v455, 1.0
  %v457 = vrcp.pop %v456
  %v458 = vmul.f32 %v456, %v457
  %v459 = vsub.f32 1.0, %v458
  %v460 = vmul.f32 %v457, %v459
  %v461 = vadd.f32 %v457, %v460
  %vm462 = vweird.f32 %v456
  %vm463 = vweird.f32 %v457
  %vm464 = vmor %vm462, %vm463
  %v465 = vsel %vm464, %v457, %v461
  %v466 = vand.u32 2147483647, %v456
  %vm467 = vcmp.eq.f32.partialorder %v466, 8.507059e+37
  %v468 = vand.u32 %v456, 2147483648
  %v469 = vor.u32 1.1754944e-38, %v468
  %v470 = vsel %vm467, %v469, %v465
  %v471 = vmul.f32 1.0, %v470
  %v472 = vsel %vm151, %v452, %v471
  %v473 = vmul.f32 %v472, %v333
  %475 = vrot.lane.b32.xlu0 %v472, 64
  %v476 = vpop.permute.xlu0 %475
  %v478 = vmul.f32 %v472, %v476
  %480 = vrot.lane.b32.xlu0 %v478, 32
  %v481 = vpop.permute.xlu0 %480
  %v483 = vadd.f32 %v473, %v481
  %v484 = vtanh.pop %v483
  %486 = vrot.lane.b32.xlu0 %v484, 64
  %v487 = vpop.permute.xlu0 %486
  %v489 = vmul.f32 %v472, %v487
  %491 = vrot.lane.b32.xlu0 %v489, 32
  %v492 = vpop.permute.xlu0 %491
  %v493 = vsel %vm158, %v492, 0
  %495 = vmatpush.msra.mxu0 0.0
  %496 = vmatpush.msra.mxu0 0.0
  %497 = vmatpush.msra.mxu0 0.0
  %498 = vmatpush.msra.mxu0 0.0
  %499 = vmatpush.msra.mxu0 0.0
  %500 = vmatpush.msra.mxu0 0.0
  %501 = vmatpush.msra.mxu0 0.0
  %502 = vmatpush.msra.mxu0 0.0
  %503 = vmatpush.msra.mxu0 0.0
  %504 = vmatpush.msra.mxu0 0.0
  %505 = vmatpush.msra.mxu0 0.0
  %506 = vmatpush.msra.mxu0 0.0
  %507 = vmatpush.msra.mxu0 %v140
  %508 = vmatpush.msra.mxu0 %v139
  %509 = vmatpush.msra.mxu0 %v138
  %510 = vmatpush.msra.mxu0 %v137
  %511 = vmatmul.f32.gmra.mxu0 %v493
  %v512 = vpop.f32.mrf.mxu0
  %v513 = vadd.f32 0.0, %v512
  %514 = vdwg.mxu0
  %s515 = scalar_lea.vmem [#allocation2], 16
  %v516 = vld [vmem:[%s515] sm:$0xff]
  %v517 = vadd.f32 %v516, %v429
  %v518 = vtanh.pop %v517
  %v519 = vxor.u32 %v517, 2147483648
  %v520 = vmul.f32 %v519, 1.442695
  %v521 = vpow.pop %v520
  %v522 = vadd.f32 %v521, 1.0
  %v523 = vrcp.pop %v522
  %v524 = vmul.f32 %v522, %v523
  %v525 = vsub.f32 1.0, %v524
  %v526 = vmul.f32 %v523, %v525
  %v527 = vadd.f32 %v523, %v526
  %vm528 = vweird.f32 %v522
  %vm529 = vweird.f32 %v523
  %vm530 = vmor %vm528, %vm529
  %v531 = vsel %vm530, %v523, %v527
  %v532 = vand.u32 2147483647, %v522
  %vm533 = vcmp.eq.f32.partialorder %v532, 8.507059e+37
  %v534 = vand.u32 %v522, 2147483648
  %v535 = vor.u32 1.1754944e-38, %v534
  %v536 = vsel %vm533, %v535, %v531
  %v537 = vmul.f32 1.0, %v536
  %v538 = vsel %vm151, %v518, %v537
  %v539 = vmul.f32 %v538, %v399
  %541 = vrot.lane.b32.xlu0 %v538, 64
  %v542 = vpop.permute.xlu0 %541
  %v544 = vmul.f32 %v538, %v542
  %546 = vrot.lane.b32.xlu0 %v544, 32
  %v547 = vpop.permute.xlu0 %546
  %v549 = vadd.f32 %v539, %v547
  %v550 = vtanh.pop %v549
  %552 = vrot.lane.b32.xlu0 %v550, 64
  %v553 = vpop.permute.xlu0 %552
  %v555 = vmul.f32 %v538, %v553
  %557 = vrot.lane.b32.xlu0 %v555, 32
  %v558 = vpop.permute.xlu0 %557
  %v559 = vsel %vm158, %v558, 0
  %561 = vmatpush.msra.mxu0 0.0
  %562 = vmatpush.msra.mxu0 0.0
  %563 = vmatpush.msra.mxu0 0.0
  %564 = vmatpush.msra.mxu0 0.0
  %565 = vmatpush.msra.mxu0 0.0
  %566 = vmatpush.msra.mxu0 0.0
  %567 = vmatpush.msra.mxu0 0.0
  %568 = vmatpush.msra.mxu0 0.0
  %569 = vmatpush.msra.mxu0 0.0
  %570 = vmatpush.msra.mxu0 0.0
  %571 = vmatpush.msra.mxu0 0.0
  %572 = vmatpush.msra.mxu0 0.0
  %573 = vmatpush.msra.mxu0 %v132
  %574 = vmatpush.msra.mxu0 %v131
  %575 = vmatpush.msra.mxu0 %v130
  %576 = vmatpush.msra.mxu0 %v129
  %577 = vmatmul.f32.gmra.mxu0 %v559
  %v578 = vpop.f32.mrf.mxu0
  %v579 = vadd.f32 0.0, %v578
  %580 = vdwg.mxu0
  %581 = vmatpush.msra.mxu0 0.0
  %582 = vmatpush.msra.mxu0 0.0
  %583 = vmatpush.msra.mxu0 0.0
  %584 = vmatpush.msra.mxu0 0.0
  %585 = vmatpush.msra.mxu0 0.0
  %586 = vmatpush.msra.mxu0 0.0
  %587 = vmatpush.msra.mxu0 0.0
  %588 = vmatpush.msra.mxu0 0.0
  %589 = vmatpush.msra.mxu0 0.0
  %590 = vmatpush.msra.mxu0 0.0
  %591 = vmatpush.msra.mxu0 0.0
  %592 = vmatpush.msra.mxu0 0.0
  %593 = vmatpush.msra.mxu0 %v136
  %594 = vmatpush.msra.mxu0 %v135
  %595 = vmatpush.msra.mxu0 %v134
  %596 = vmatpush.msra.mxu0 %v133
  %597 = vmatmul.f32.gmra.mxu0 %v559
  %v598 = vpop.f32.mrf.mxu0
  %v599 = vadd.f32 %v513, %v598
  %600 = vdwg.mxu0
  %v601 = vadd.f32 %v599, %v295
  %v602 = vtanh.pop %v601
  %v603 = vxor.u32 %v601, 2147483648
  %v604 = vmul.f32 %v603, 1.442695
  %v605 = vpow.pop %v604
  %v606 = vadd.f32 %v605, 1.0
  %v607 = vrcp.pop %v606
  %v608 = vmul.f32 %v606, %v607
  %v609 = vsub.f32 1.0, %v608
  %v610 = vmul.f32 %v607, %v609
  %v611 = vadd.f32 %v607, %v610
  %vm612 = vweird.f32 %v606
  %vm613 = vweird.f32 %v607
  %vm614 = vmor %vm612, %vm613
  %v615 = vsel %vm614, %v607, %v611
  %v616 = vand.u32 2147483647, %v606
  %vm617 = vcmp.eq.f32.partialorder %v616, 8.507059e+37
  %v618 = vand.u32 %v606, 2147483648
  %v619 = vor.u32 1.1754944e-38, %v618
  %v620 = vsel %vm617, %v619, %v615
  %v621 = vmul.f32 1.0, %v620
  %v622 = vsel %vm151, %v602, %v621
  %v623 = vmul.f32 %v622, %v483
  %625 = vrot.lane.b32.xlu0 %v622, 64
  %v626 = vpop.permute.xlu0 %625
  %v628 = vmul.f32 %v622, %v626
  %630 = vrot.lane.b32.xlu0 %v628, 32
  %v631 = vpop.permute.xlu0 %630
  %v633 = vadd.f32 %v623, %v631
  %v634 = vtanh.pop %v633
  %636 = vrot.lane.b32.xlu0 %v634, 64
  %v637 = vpop.permute.xlu0 %636
  %v639 = vmul.f32 %v622, %v637
  %641 = vrot.lane.b32.xlu0 %v639, 32
  %v642 = vpop.permute.xlu0 %641
  %v643 = vsel %vm158, %v642, 0
  %645 = vmatpush.msra.mxu0 0.0
  %646 = vmatpush.msra.mxu0 0.0
  %647 = vmatpush.msra.mxu0 0.0
  %648 = vmatpush.msra.mxu0 0.0
  %649 = vmatpush.msra.mxu0 0.0
  %650 = vmatpush.msra.mxu0 0.0
  %651 = vmatpush.msra.mxu0 0.0
  %652 = vmatpush.msra.mxu0 0.0
  %653 = vmatpush.msra.mxu0 0.0
  %654 = vmatpush.msra.mxu0 0.0
  %655 = vmatpush.msra.mxu0 0.0
  %656 = vmatpush.msra.mxu0 0.0
  %657 = vmatpush.msra.mxu0 %v140
  %658 = vmatpush.msra.mxu0 %v139
  %659 = vmatpush.msra.mxu0 %v138
  %660 = vmatpush.msra.mxu0 %v137
  %661 = vmatmul.f32.gmra.mxu0 %v643
  %v662 = vpop.f32.mrf.mxu0
  %v663 = vadd.f32 0.0, %v662
  %664 = vdwg.mxu0
  %s665 = scalar_lea.vmem [#allocation2], 24
  %v666 = vld [vmem:[%s665] sm:$0xff]
  %v667 = vadd.f32 %v666, %v579
  %v668 = vtanh.pop %v667
  %v669 = vxor.u32 %v667, 2147483648
  %v670 = vmul.f32 %v669, 1.442695
  %v671 = vpow.pop %v670
  %v672 = vadd.f32 %v671, 1.0
  %v673 = vrcp.pop %v672
  %v674 = vmul.f32 %v672, %v673
  %v675 = vsub.f32 1.0, %v674
  %v676 = vmul.f32 %v673, %v675
  %v677 = vadd.f32 %v673, %v676
  %vm678 = vweird.f32 %v672
  %vm679 = vweird.f32 %v673
  %vm680 = vmor %vm678, %vm679
  %v681 = vsel %vm680, %v673, %v677
  %v682 = vand.u32 2147483647, %v672
  %vm683 = vcmp.eq.f32.partialorder %v682, 8.507059e+37
  %v684 = vand.u32 %v672, 2147483648
  %v685 = vor.u32 1.1754944e-38, %v684
  %v686 = vsel %vm683, %v685, %v681
  %v687 = vmul.f32 1.0, %v686
  %v688 = vsel %vm151, %v668, %v687
  %v689 = vmul.f32 %v688, %v549
  %691 = vrot.lane.b32.xlu0 %v688, 64
  %v692 = vpop.permute.xlu0 %691
  %v694 = vmul.f32 %v688, %v692
  %696 = vrot.lane.b32.xlu0 %v694, 32
  %v697 = vpop.permute.xlu0 %696
  %v699 = vadd.f32 %v689, %v697
  %v700 = vtanh.pop %v699
  %702 = vrot.lane.b32.xlu0 %v700, 64
  %v703 = vpop.permute.xlu0 %702
  %v705 = vmul.f32 %v688, %v703
  %707 = vrot.lane.b32.xlu0 %v705, 32
  %v708 = vpop.permute.xlu0 %707
  %v709 = vsel %vm158, %v708, 0
  %711 = vmatpush.msra.mxu0 0.0
  %712 = vmatpush.msra.mxu0 0.0
  %713 = vmatpush.msra.mxu0 0.0
  %714 = vmatpush.msra.mxu0 0.0
  %715 = vmatpush.msra.mxu0 0.0
  %716 = vmatpush.msra.mxu0 0.0
  %717 = vmatpush.msra.mxu0 0.0
  %718 = vmatpush.msra.mxu0 0.0
  %719 = vmatpush.msra.mxu0 0.0
  %720 = vmatpush.msra.mxu0 0.0
  %721 = vmatpush.msra.mxu0 0.0
  %722 = vmatpush.msra.mxu0 0.0
  %723 = vmatpush.msra.mxu0 %v132
  %724 = vmatpush.msra.mxu0 %v131
  %725 = vmatpush.msra.mxu0 %v130
  %726 = vmatpush.msra.mxu0 %v129
  %727 = vmatmul.f32.gmra.mxu0 %v709
  %v728 = vpop.f32.mrf.mxu0
  %v729 = vadd.f32 0.0, %v728
  %730 = vdwg.mxu0
  %731 = vmatpush.msra.mxu0 0.0
  %732 = vmatpush.msra.mxu0 0.0
  %733 = vmatpush.msra.mxu0 0.0
  %734 = vmatpush.msra.mxu0 0.0
  %735 = vmatpush.msra.mxu0 0.0
  %736 = vmatpush.msra.mxu0 0.0
  %737 = vmatpush.msra.mxu0 0.0
  %738 = vmatpush.msra.mxu0 0.0
  %739 = vmatpush.msra.mxu0 0.0
  %740 = vmatpush.msra.mxu0 0.0
  %741 = vmatpush.msra.mxu0 0.0
  %742 = vmatpush.msra.mxu0 0.0
  %743 = vmatpush.msra.mxu0 %v136
  %744 = vmatpush.msra.mxu0 %v135
  %745 = vmatpush.msra.mxu0 %v134
  %746 = vmatpush.msra.mxu0 %v133
  %747 = vmatmul.f32.gmra.mxu0 %v709
  %v748 = vpop.f32.mrf.mxu0
  %v749 = vadd.f32 %v663, %v748
  %750 = vdwg.mxu0
  %v751 = vadd.f32 %v749, %v295
  %v752 = vtanh.pop %v751
  %v753 = vxor.u32 %v751, 2147483648
  %v754 = vmul.f32 %v753, 1.442695
  %v755 = vpow.pop %v754
  %v756 = vadd.f32 %v755, 1.0
  %v757 = vrcp.pop %v756
  %v758 = vmul.f32 %v756, %v757
  %v759 = vsub.f32 1.0, %v758
  %v760 = vmul.f32 %v757, %v759
  %v761 = vadd.f32 %v757, %v760
  %vm762 = vweird.f32 %v756
  %vm763 = vweird.f32 %v757
  %vm764 = vmor %vm762, %vm763
  %v765 = vsel %vm764, %v757, %v761
  %v766 = vand.u32 2147483647, %v756
  %vm767 = vcmp.eq.f32.partialorder %v766, 8.507059e+37
  %v768 = vand.u32 %v756, 2147483648
  %v769 = vor.u32 1.1754944e-38, %v768
  %v770 = vsel %vm767, %v769, %v765
  %v771 = vmul.f32 1.0, %v770
  %v772 = vsel %vm151, %v752, %v771
  %v773 = vmul.f32 %v772, %v633
  %775 = vrot.lane.b32.xlu0 %v772, 64
  %v776 = vpop.permute.xlu0 %775
  %v778 = vmul.f32 %v772, %v776
  %780 = vrot.lane.b32.xlu0 %v778, 32
  %v781 = vpop.permute.xlu0 %780
  %v783 = vadd.f32 %v773, %v781
  %v784 = vtanh.pop %v783
  %786 = vrot.lane.b32.xlu0 %v784, 64
  %v787 = vpop.permute.xlu0 %786
  %v789 = vmul.f32 %v772, %v787
  %791 = vrot.lane.b32.xlu0 %v789, 32
  %v792 = vpop.permute.xlu0 %791
  %v793 = vsel %vm158, %v792, 0
  %795 = vmatpush.msra.mxu0 0.0
  %796 = vmatpush.msra.mxu0 0.0
  %797 = vmatpush.msra.mxu0 0.0
  %798 = vmatpush.msra.mxu0 0.0
  %799 = vmatpush.msra.mxu0 0.0
  %800 = vmatpush.msra.mxu0 0.0
  %801 = vmatpush.msra.mxu0 0.0
  %802 = vmatpush.msra.mxu0 0.0
  %803 = vmatpush.msra.mxu0 0.0
  %804 = vmatpush.msra.mxu0 0.0
  %805 = vmatpush.msra.mxu0 0.0
  %806 = vmatpush.msra.mxu0 0.0
  %807 = vmatpush.msra.mxu0 %v140
  %808 = vmatpush.msra.mxu0 %v139
  %809 = vmatpush.msra.mxu0 %v138
  %810 = vmatpush.msra.mxu0 %v137
  %811 = vmatmul.f32.gmra.mxu0 %v793
  %v812 = vpop.f32.mrf.mxu0
  %v813 = vadd.f32 0.0, %v812
  %814 = vdwg.mxu0
  %s815 = scalar_lea.vmem [#allocation2], 32
  %v816 = vld [vmem:[%s815] sm:$0xff]
  %v817 = vadd.f32 %v816, %v729
  %v818 = vtanh.pop %v817
  %v819 = vxor.u32 %v817, 2147483648
  %v820 = vmul.f32 %v819, 1.442695
  %v821 = vpow.pop %v820
  %v822 = vadd.f32 %v821, 1.0
  %v823 = vrcp.pop %v822
  %v824 = vmul.f32 %v822, %v823
  %v825 = vsub.f32 1.0, %v824
  %v826 = vmul.f32 %v823, %v825
  %v827 = vadd.f32 %v823, %v826
  %vm828 = vweird.f32 %v822
  %vm829 = vweird.f32 %v823
  %vm830 = vmor %vm828, %vm829
  %v831 = vsel %vm830, %v823, %v827
  %v832 = vand.u32 2147483647, %v822
  %vm833 = vcmp.eq.f32.partialorder %v832, 8.507059e+37
  %v834 = vand.u32 %v822, 2147483648
  %v835 = vor.u32 1.1754944e-38, %v834
  %v836 = vsel %vm833, %v835, %v831
  %v837 = vmul.f32 1.0, %v836
  %v838 = vsel %vm151, %v818, %v837
  %v839 = vmul.f32 %v838, %v699
  %841 = vrot.lane.b32.xlu0 %v838, 64
  %v842 = vpop.permute.xlu0 %841
  %v844 = vmul.f32 %v838, %v842
  %846 = vrot.lane.b32.xlu0 %v844, 32
  %v847 = vpop.permute.xlu0 %846
  %v849 = vadd.f32 %v839, %v847
  %v850 = vtanh.pop %v849
  %852 = vrot.lane.b32.xlu0 %v850, 64
  %v853 = vpop.permute.xlu0 %852
  %v855 = vmul.f32 %v838, %v853
  %857 = vrot.lane.b32.xlu0 %v855, 32
  %v858 = vpop.permute.xlu0 %857
  %v859 = vsel %vm158, %v858, 0
  %861 = vmatpush.msra.mxu0 0.0
  %862 = vmatpush.msra.mxu0 0.0
  %863 = vmatpush.msra.mxu0 0.0
  %864 = vmatpush.msra.mxu0 0.0
  %865 = vmatpush.msra.mxu0 0.0
  %866 = vmatpush.msra.mxu0 0.0
  %867 = vmatpush.msra.mxu0 0.0
  %868 = vmatpush.msra.mxu0 0.0
  %869 = vmatpush.msra.mxu0 0.0
  %870 = vmatpush.msra.mxu0 0.0
  %871 = vmatpush.msra.mxu0 0.0
  %872 = vmatpush.msra.mxu0 0.0
  %873 = vmatpush.msra.mxu0 %v132
  %874 = vmatpush.msra.mxu0 %v131
  %875 = vmatpush.msra.mxu0 %v130
  %876 = vmatpush.msra.mxu0 %v129
  %877 = vmatmul.f32.gmra.mxu0 %v859
  %v878 = vpop.f32.mrf.mxu0
  %v879 = vadd.f32 0.0, %v878
  %880 = vdwg.mxu0
  %881 = vmatpush.msra.mxu0 0.0
  %882 = vmatpush.msra.mxu0 0.0
  %883 = vmatpush.msra.mxu0 0.0
  %884 = vmatpush.msra.mxu0 0.0
  %885 = vmatpush.msra.mxu0 0.0
  %886 = vmatpush.msra.mxu0 0.0
  %887 = vmatpush.msra.mxu0 0.0
  %888 = vmatpush.msra.mxu0 0.0
  %889 = vmatpush.msra.mxu0 0.0
  %890 = vmatpush.msra.mxu0 0.0
  %891 = vmatpush.msra.mxu0 0.0
  %892 = vmatpush.msra.mxu0 0.0
  %893 = vmatpush.msra.mxu0 %v136
  %894 = vmatpush.msra.mxu0 %v135
  %895 = vmatpush.msra.mxu0 %v134
  %896 = vmatpush.msra.mxu0 %v133
  %897 = vmatmul.f32.gmra.mxu0 %v859
  %v898 = vpop.f32.mrf.mxu0
  %v899 = vadd.f32 %v813, %v898
  %900 = vdwg.mxu0
  %v901 = vadd.f32 %v899, %v295
  %v902 = vtanh.pop %v901
  %v903 = vxor.u32 %v901, 2147483648
  %v904 = vmul.f32 %v903, 1.442695
  %v905 = vpow.pop %v904
  %v906 = vadd.f32 %v905, 1.0
  %v907 = vrcp.pop %v906
  %v908 = vmul.f32 %v906, %v907
  %v909 = vsub.f32 1.0, %v908
  %v910 = vmul.f32 %v907, %v909
  %v911 = vadd.f32 %v907, %v910
  %vm912 = vweird.f32 %v906
  %vm913 = vweird.f32 %v907
  %vm914 = vmor %vm912, %vm913
  %v915 = vsel %vm914, %v907, %v911
  %v916 = vand.u32 2147483647, %v906
  %vm917 = vcmp.eq.f32.partialorder %v916, 8.507059e+37
  %v918 = vand.u32 %v906, 2147483648
  %v919 = vor.u32 1.1754944e-38, %v918
  %v920 = vsel %vm917, %v919, %v915
  %v921 = vmul.f32 1.0, %v920
  %v922 = vsel %vm151, %v902, %v921
  %v923 = vmul.f32 %v922, %v783
  %925 = vrot.lane.b32.xlu0 %v922, 64
  %v926 = vpop.permute.xlu0 %925
  %v928 = vmul.f32 %v922, %v926
  %930 = vrot.lane.b32.xlu0 %v928, 32
  %v931 = vpop.permute.xlu0 %930
  %v933 = vadd.f32 %v923, %v931
  %v934 = vtanh.pop %v933
  %936 = vrot.lane.b32.xlu0 %v934, 64
  %v937 = vpop.permute.xlu0 %936
  %v939 = vmul.f32 %v922, %v937
  %941 = vrot.lane.b32.xlu0 %v939, 32
  %v942 = vpop.permute.xlu0 %941
  %v943 = vsel %vm158, %v942, 0
  %945 = vmatpush.msra.mxu0 0.0
  %946 = vmatpush.msra.mxu0 0.0
  %947 = vmatpush.msra.mxu0 0.0
  %948 = vmatpush.msra.mxu0 0.0
  %949 = vmatpush.msra.mxu0 0.0
  %950 = vmatpush.msra.mxu0 0.0
  %951 = vmatpush.msra.mxu0 0.0
  %952 = vmatpush.msra.mxu0 0.0
  %953 = vmatpush.msra.mxu0 0.0
  %954 = vmatpush.msra.mxu0 0.0
  %955 = vmatpush.msra.mxu0 0.0
  %956 = vmatpush.msra.mxu0 0.0
  %957 = vmatpush.msra.mxu0 %v140
  %958 = vmatpush.msra.mxu0 %v139
  %959 = vmatpush.msra.mxu0 %v138
  %960 = vmatpush.msra.mxu0 %v137
  %961 = vmatmul.f32.gmra.mxu0 %v943
  %v962 = vpop.f32.mrf.mxu0
  %v963 = vadd.f32 0.0, %v962
  %964 = vdwg.mxu0
  %s965 = scalar_lea.vmem [#allocation2], 40
  %v966 = vld [vmem:[%s965] sm:$0xff]
  %v967 = vadd.f32 %v966, %v879
  %v968 = vtanh.pop %v967
  %v969 = vxor.u32 %v967, 2147483648
  %v970 = vmul.f32 %v969, 1.442695
  %v971 = vpow.pop %v970
  %v972 = vadd.f32 %v971, 1.0
  %v973 = vrcp.pop %v972
  %v974 = vmul.f32 %v972, %v973
  %v975 = vsub.f32 1.0, %v974
  %v976 = vmul.f32 %v973, %v975
  %v977 = vadd.f32 %v973, %v976
  %vm978 = vweird.f32 %v972
  %vm979 = vweird.f32 %v973
  %vm980 = vmor %vm978, %vm979
  %v981 = vsel %vm980, %v973, %v977
  %v982 = vand.u32 2147483647, %v972
  %vm983 = vcmp.eq.f32.partialorder %v982, 8.507059e+37
  %v984 = vand.u32 %v972, 2147483648
  %v985 = vor.u32 1.1754944e-38, %v984
  %v986 = vsel %vm983, %v985, %v981
  %v987 = vmul.f32 1.0, %v986
  %v988 = vsel %vm151, %v968, %v987
  %v989 = vmul.f32 %v988, %v849
  %991 = vrot.lane.b32.xlu0 %v988, 64
  %v992 = vpop.permute.xlu0 %991
  %v994 = vmul.f32 %v988, %v992
  %996 = vrot.lane.b32.xlu0 %v994, 32
  %v997 = vpop.permute.xlu0 %996
  %v999 = vadd.f32 %v989, %v997
  %v1000 = vtanh.pop %v999
  %1002 = vrot.lane.b32.xlu0 %v1000, 64
  %v1003 = vpop.permute.xlu0 %1002
  %v1005 = vmul.f32 %v988, %v1003
  %1007 = vrot.lane.b32.xlu0 %v1005, 32
  %v1008 = vpop.permute.xlu0 %1007
  %v1009 = vsel %vm158, %v1008, 0
  %1011 = vmatpush.msra.mxu0 0.0
  %1012 = vmatpush.msra.mxu0 0.0
  %1013 = vmatpush.msra.mxu0 0.0
  %1014 = vmatpush.msra.mxu0 0.0
  %1015 = vmatpush.msra.mxu0 0.0
  %1016 = vmatpush.msra.mxu0 0.0
  %1017 = vmatpush.msra.mxu0 0.0
  %1018 = vmatpush.msra.mxu0 0.0
  %1019 = vmatpush.msra.mxu0 0.0
  %1020 = vmatpush.msra.mxu0 0.0
  %1021 = vmatpush.msra.mxu0 0.0
  %1022 = vmatpush.msra.mxu0 0.0
  %1023 = vmatpush.msra.mxu0 %v132
  %1024 = vmatpush.msra.mxu0 %v131
  %1025 = vmatpush.msra.mxu0 %v130
  %1026 = vmatpush.msra.mxu0 %v129
  %1027 = vmatmul.f32.gmra.mxu0 %v1009
  %v1028 = vpop.f32.mrf.mxu0
  %v1029 = vadd.f32 0.0, %v1028
  %1030 = vdwg.mxu0
  %1031 = vmatpush.msra.mxu0 0.0
  %1032 = vmatpush.msra.mxu0 0.0
  %1033 = vmatpush.msra.mxu0 0.0
  %1034 = vmatpush.msra.mxu0 0.0
  %1035 = vmatpush.msra.mxu0 0.0
  %1036 = vmatpush.msra.mxu0 0.0
  %1037 = vmatpush.msra.mxu0 0.0
  %1038 = vmatpush.msra.mxu0 0.0
  %1039 = vmatpush.msra.mxu0 0.0
  %1040 = vmatpush.msra.mxu0 0.0
  %1041 = vmatpush.msra.mxu0 0.0
  %1042 = vmatpush.msra.mxu0 0.0
  %1043 = vmatpush.msra.mxu0 %v136
  %1044 = vmatpush.msra.mxu0 %v135
  %1045 = vmatpush.msra.mxu0 %v134
  %1046 = vmatpush.msra.mxu0 %v133
  %1047 = vmatmul.f32.gmra.mxu0 %v1009
  %v1048 = vpop.f32.mrf.mxu0
  %v1049 = vadd.f32 %v963, %v1048
  %1050 = vdwg.mxu0
  %v1051 = vadd.f32 %v1049, %v295
  %v1052 = vtanh.pop %v1051
  %v1053 = vxor.u32 %v1051, 2147483648
  %v1054 = vmul.f32 %v1053, 1.442695
  %v1055 = vpow.pop %v1054
  %v1056 = vadd.f32 %v1055, 1.0
  %v1057 = vrcp.pop %v1056
  %v1058 = vmul.f32 %v1056, %v1057
  %v1059 = vsub.f32 1.0, %v1058
  %v1060 = vmul.f32 %v1057, %v1059
  %v1061 = vadd.f32 %v1057, %v1060
  %vm1062 = vweird.f32 %v1056
  %vm1063 = vweird.f32 %v1057
  %vm1064 = vmor %vm1062, %vm1063
  %v1065 = vsel %vm1064, %v1057, %v1061
  %v1066 = vand.u32 2147483647, %v1056
  %vm1067 = vcmp.eq.f32.partialorder %v1066, 8.507059e+37
  %v1068 = vand.u32 %v1056, 2147483648
  %v1069 = vor.u32 1.1754944e-38, %v1068
  %v1070 = vsel %vm1067, %v1069, %v1065
  %v1071 = vmul.f32 1.0, %v1070
  %v1072 = vsel %vm151, %v1052, %v1071
  %v1073 = vmul.f32 %v1072, %v933
  %1075 = vrot.lane.b32.xlu0 %v1072, 64
  %v1076 = vpop.permute.xlu0 %1075
  %v1078 = vmul.f32 %v1072, %v1076
  %1080 = vrot.lane.b32.xlu0 %v1078, 32
  %v1081 = vpop.permute.xlu0 %1080
  %v1083 = vadd.f32 %v1073, %v1081
  %v1084 = vtanh.pop %v1083
  %1086 = vrot.lane.b32.xlu0 %v1084, 64
  %v1087 = vpop.permute.xlu0 %1086
  %v1089 = vmul.f32 %v1072, %v1087
  %1091 = vrot.lane.b32.xlu0 %v1089, 32
  %v1092 = vpop.permute.xlu0 %1091
  %v1093 = vsel %vm158, %v1092, 0
  %1095 = vmatpush.msra.mxu0 0.0
  %1096 = vmatpush.msra.mxu0 0.0
  %1097 = vmatpush.msra.mxu0 0.0
  %1098 = vmatpush.msra.mxu0 0.0
  %1099 = vmatpush.msra.mxu0 0.0
  %1100 = vmatpush.msra.mxu0 0.0
  %1101 = vmatpush.msra.mxu0 0.0
  %1102 = vmatpush.msra.mxu0 0.0
  %1103 = vmatpush.msra.mxu0 0.0
  %1104 = vmatpush.msra.mxu0 0.0
  %1105 = vmatpush.msra.mxu0 0.0
  %1106 = vmatpush.msra.mxu0 0.0
  %1107 = vmatpush.msra.mxu0 %v140
  %1108 = vmatpush.msra.mxu0 %v139
  %1109 = vmatpush.msra.mxu0 %v138
  %1110 = vmatpush.msra.mxu0 %v137
  %1111 = vmatmul.f32.gmra.mxu0 %v1093
  %v1112 = vpop.f32.mrf.mxu0
  %v1113 = vadd.f32 0.0, %v1112
  %1114 = vdwg.mxu0
  %s1115 = scalar_lea.vmem [#allocation2], 48
  %v1116 = vld [vmem:[%s1115] sm:$0xff]
  %v1117 = vadd.f32 %v1116, %v1029
  %v1118 = vtanh.pop %v1117
  %v1119 = vxor.u32 %v1117, 2147483648
  %v1120 = vmul.f32 %v1119, 1.442695
  %v1121 = vpow.pop %v1120
  %v1122 = vadd.f32 %v1121, 1.0
  %v1123 = vrcp.pop %v1122
  %v1124 = vmul.f32 %v1122, %v1123
  %v1125 = vsub.f32 1.0, %v1124
  %v1126 = vmul.f32 %v1123, %v1125
  %v1127 = vadd.f32 %v1123, %v1126
  %vm1128 = vweird.f32 %v1122
  %vm1129 = vweird.f32 %v1123
  %vm1130 = vmor %vm1128, %vm1129
  %v1131 = vsel %vm1130, %v1123, %v1127
  %v1132 = vand.u32 2147483647, %v1122
  %vm1133 = vcmp.eq.f32.partialorder %v1132, 8.507059e+37
  %v1134 = vand.u32 %v1122, 2147483648
  %v1135 = vor.u32 1.1754944e-38, %v1134
  %v1136 = vsel %vm1133, %v1135, %v1131
  %v1137 = vmul.f32 1.0, %v1136
  %v1138 = vsel %vm151, %v1118, %v1137
  %v1139 = vmul.f32 %v1138, %v999
  %1141 = vrot.lane.b32.xlu0 %v1138, 64
  %v1142 = vpop.permute.xlu0 %1141
  %v1144 = vmul.f32 %v1138, %v1142
  %1146 = vrot.lane.b32.xlu0 %v1144, 32
  %v1147 = vpop.permute.xlu0 %1146
  %v1149 = vadd.f32 %v1139, %v1147
  %v1150 = vtanh.pop %v1149
  %1152 = vrot.lane.b32.xlu0 %v1150, 64
  %v1153 = vpop.permute.xlu0 %1152
  %v1155 = vmul.f32 %v1138, %v1153
  %1157 = vrot.lane.b32.xlu0 %v1155, 32
  %v1158 = vpop.permute.xlu0 %1157
  %v1159 = vsel %vm158, %v1158, 0
  %1161 = vmatpush.msra.mxu0 0.0
  %1162 = vmatpush.msra.mxu0 0.0
  %1163 = vmatpush.msra.mxu0 0.0
  %1164 = vmatpush.msra.mxu0 0.0
  %1165 = vmatpush.msra.mxu0 0.0
  %1166 = vmatpush.msra.mxu0 0.0
  %1167 = vmatpush.msra.mxu0 0.0
  %1168 = vmatpush.msra.mxu0 0.0
  %1169 = vmatpush.msra.mxu0 0.0
  %1170 = vmatpush.msra.mxu0 0.0
  %1171 = vmatpush.msra.mxu0 0.0
  %1172 = vmatpush.msra.mxu0 0.0
  %1173 = vmatpush.msra.mxu0 %v132
  %1174 = vmatpush.msra.mxu0 %v131
  %1175 = vmatpush.msra.mxu0 %v130
  %1176 = vmatpush.msra.mxu0 %v129
  %1177 = vmatmul.f32.gmra.mxu0 %v1159
  %v1178 = vpop.f32.mrf.mxu0
  %v1179 = vadd.f32 0.0, %v1178
  %1180 = vdwg.mxu0
  %1181 = vmatpush.msra.mxu0 0.0
  %1182 = vmatpush.msra.mxu0 0.0
  %1183 = vmatpush.msra.mxu0 0.0
  %1184 = vmatpush.msra.mxu0 0.0
  %1185 = vmatpush.msra.mxu0 0.0
  %1186 = vmatpush.msra.mxu0 0.0
  %1187 = vmatpush.msra.mxu0 0.0
  %1188 = vmatpush.msra.mxu0 0.0
  %1189 = vmatpush.msra.mxu0 0.0
  %1190 = vmatpush.msra.mxu0 0.0
  %1191 = vmatpush.msra.mxu0 0.0
  %1192 = vmatpush.msra.mxu0 0.0
  %1193 = vmatpush.msra.mxu0 %v136
  %1194 = vmatpush.msra.mxu0 %v135
  %1195 = vmatpush.msra.mxu0 %v134
  %1196 = vmatpush.msra.mxu0 %v133
  %1197 = vmatmul.f32.gmra.mxu0 %v1159
  %v1198 = vpop.f32.mrf.mxu0
  %v1199 = vadd.f32 %v1113, %v1198
  %1200 = vdwg.mxu0
  %v1201 = vadd.f32 %v1199, %v295
  %v1202 = vtanh.pop %v1201
  %v1203 = vxor.u32 %v1201, 2147483648
  %v1204 = vmul.f32 %v1203, 1.442695
  %v1205 = vpow.pop %v1204
  %v1206 = vadd.f32 %v1205, 1.0
  %v1207 = vrcp.pop %v1206
  %v1208 = vmul.f32 %v1206, %v1207
  %v1209 = vsub.f32 1.0, %v1208
  %v1210 = vmul.f32 %v1207, %v1209
  %v1211 = vadd.f32 %v1207, %v1210
  %vm1212 = vweird.f32 %v1206
  %vm1213 = vweird.f32 %v1207
  %vm1214 = vmor %vm1212, %vm1213
  %v1215 = vsel %vm1214, %v1207, %v1211
  %v1216 = vand.u32 2147483647, %v1206
  %vm1217 = vcmp.eq.f32.partialorder %v1216, 8.507059e+37
  %v1218 = vand.u32 %v1206, 2147483648
  %v1219 = vor.u32 1.1754944e-38, %v1218
  %v1220 = vsel %vm1217, %v1219, %v1215
  %v1221 = vmul.f32 1.0, %v1220
  %v1222 = vsel %vm151, %v1202, %v1221
  %v1223 = vmul.f32 %v1222, %v1083
  %1225 = vrot.lane.b32.xlu0 %v1222, 64
  %v1226 = vpop.permute.xlu0 %1225
  %v1228 = vmul.f32 %v1222, %v1226
  %1230 = vrot.lane.b32.xlu0 %v1228, 32
  %v1231 = vpop.permute.xlu0 %1230
  %v1233 = vadd.f32 %v1223, %v1231
  %v1234 = vtanh.pop %v1233
  %1236 = vrot.lane.b32.xlu0 %v1234, 64
  %v1237 = vpop.permute.xlu0 %1236
  %v1239 = vmul.f32 %v1222, %v1237
  %1241 = vrot.lane.b32.xlu0 %v1239, 32
  %v1242 = vpop.permute.xlu0 %1241
  %v1243 = vsel %vm158, %v1242, 0
  %1245 = vmatpush.msra.mxu0 0.0
  %1246 = vmatpush.msra.mxu0 0.0
  %1247 = vmatpush.msra.mxu0 0.0
  %1248 = vmatpush.msra.mxu0 0.0
  %1249 = vmatpush.msra.mxu0 0.0
  %1250 = vmatpush.msra.mxu0 0.0
  %1251 = vmatpush.msra.mxu0 0.0
  %1252 = vmatpush.msra.mxu0 0.0
  %1253 = vmatpush.msra.mxu0 0.0
  %1254 = vmatpush.msra.mxu0 0.0
  %1255 = vmatpush.msra.mxu0 0.0
  %1256 = vmatpush.msra.mxu0 0.0
  %1257 = vmatpush.msra.mxu0 %v140
  %1258 = vmatpush.msra.mxu0 %v139
  %1259 = vmatpush.msra.mxu0 %v138
  %1260 = vmatpush.msra.mxu0 %v137
  %1261 = vmatmul.f32.gmra.mxu0 %v1243
  %v1262 = vpop.f32.mrf.mxu0
  %v1263 = vadd.f32 0.0, %v1262
  %1264 = vdwg.mxu0
  %s1265 = scalar_lea.vmem [#allocation2], 56
  %v1266 = vld [vmem:[%s1265] sm:$0xff]
  %v1267 = vadd.f32 %v1266, %v1179
  %v1268 = vtanh.pop %v1267
  %v1269 = vxor.u32 %v1267, 2147483648
  %v1270 = vmul.f32 %v1269, 1.442695
  %v1271 = vpow.pop %v1270
  %v1272 = vadd.f32 %v1271, 1.0
  %v1273 = vrcp.pop %v1272
  %v1274 = vmul.f32 %v1272, %v1273
  %v1275 = vsub.f32 1.0, %v1274
  %v1276 = vmul.f32 %v1273, %v1275
  %v1277 = vadd.f32 %v1273, %v1276
  %vm1278 = vweird.f32 %v1272
  %vm1279 = vweird.f32 %v1273
  %vm1280 = vmor %vm1278, %vm1279
  %v1281 = vsel %vm1280, %v1273, %v1277
  %v1282 = vand.u32 2147483647, %v1272
  %vm1283 = vcmp.eq.f32.partialorder %v1282, 8.507059e+37
  %v1284 = vand.u32 %v1272, 2147483648
  %v1285 = vor.u32 1.1754944e-38, %v1284
  %v1286 = vsel %vm1283, %v1285, %v1281
  %v1287 = vmul.f32 1.0, %v1286
  %v1288 = vsel %vm151, %v1268, %v1287
  %v1289 = vmul.f32 %v1288, %v1149
  %1291 = vrot.lane.b32.xlu0 %v1288, 64
  %v1292 = vpop.permute.xlu0 %1291
  %v1294 = vmul.f32 %v1288, %v1292
  %1296 = vrot.lane.b32.xlu0 %v1294, 32
  %v1297 = vpop.permute.xlu0 %1296
  %v1299 = vadd.f32 %v1289, %v1297
  %v1300 = vtanh.pop %v1299
  %1302 = vrot.lane.b32.xlu0 %v1300, 64
  %v1303 = vpop.permute.xlu0 %1302
  %v1305 = vmul.f32 %v1288, %v1303
  %1307 = vrot.lane.b32.xlu0 %v1305, 32
  %v1308 = vpop.permute.xlu0 %1307
  %v1309 = vsel %vm158, %v1308, 0
  %1311 = vmatpush.msra.mxu0 0.0
  %1312 = vmatpush.msra.mxu0 0.0
  %1313 = vmatpush.msra.mxu0 0.0
  %1314 = vmatpush.msra.mxu0 0.0
  %1315 = vmatpush.msra.mxu0 0.0
  %1316 = vmatpush.msra.mxu0 0.0
  %1317 = vmatpush.msra.mxu0 0.0
  %1318 = vmatpush.msra.mxu0 0.0
  %1319 = vmatpush.msra.mxu0 0.0
  %1320 = vmatpush.msra.mxu0 0.0
  %1321 = vmatpush.msra.mxu0 0.0
  %1322 = vmatpush.msra.mxu0 0.0
  %1323 = vmatpush.msra.mxu0 %v136
  %1324 = vmatpush.msra.mxu0 %v135
  %1325 = vmatpush.msra.mxu0 %v134
  %1326 = vmatpush.msra.mxu0 %v133
  %1327 = vmatmul.f32.gmra.mxu0 %v1309
  %v1328 = vpop.f32.mrf.mxu0
  %v1329 = vadd.f32 %v1263, %v1328
  %1330 = vdwg.mxu0
  %v1331 = vadd.f32 %v1329, %v295
  %v1332 = vtanh.pop %v1331
  %v1333 = vxor.u32 %v1331, 2147483648
  %v1334 = vmul.f32 %v1333, 1.442695
  %v1335 = vpow.pop %v1334
  %v1336 = vadd.f32 %v1335, 1.0
  %v1337 = vrcp.pop %v1336
  %v1338 = vmul.f32 %v1336, %v1337
  %v1339 = vsub.f32 1.0, %v1338
  %v1340 = vmul.f32 %v1337, %v1339
  %v1341 = vadd.f32 %v1337, %v1340
  %vm1342 = vweird.f32 %v1336
  %vm1343 = vweird.f32 %v1337
  %vm1344 = vmor %vm1342, %vm1343
  %v1345 = vsel %vm1344, %v1337, %v1341
  %v1346 = vand.u32 2147483647, %v1336
  %vm1347 = vcmp.eq.f32.partialorder %v1346, 8.507059e+37
  %v1348 = vand.u32 %v1336, 2147483648
  %v1349 = vor.u32 1.1754944e-38, %v1348
  %v1350 = vsel %vm1347, %v1349, %v1345
  %v1351 = vmul.f32 1.0, %v1350
  %v1352 = vsel %vm151, %v1332, %v1351
  %v1353 = vmul.f32 %v1352, %v1233
  %1355 = vrot.lane.b32.xlu0 %v1352, 64
  %v1356 = vpop.permute.xlu0 %1355
  %v1358 = vmul.f32 %v1352, %v1356
  %1360 = vrot.lane.b32.xlu0 %v1358, 32
  %v1361 = vpop.permute.xlu0 %1360
  %v1363 = vadd.f32 %v1353, %v1361
  %v1364 = vtanh.pop %v1363
  %1366 = vrot.lane.b32.xlu0 %v1364, 64
  %v1367 = vpop.permute.xlu0 %1366
  %v1369 = vmul.f32 %v1352, %v1367
  %1371 = vst.msk [vmem:[%s12] sm:$0xff] %vm158, %v1308
  %1373 = vrot.lane.b32.xlu0 %v1299, 96
  %v1374 = vpop.permute.xlu0 %1373
  %1376 = vst.msk [vmem:[%s13] sm:$0xff] %vm158, %v1374
  %1378 = vrot.lane.b32.xlu0 %v1369, 32
  %v1379 = vpop.permute.xlu0 %1378
  %s1381 = scalar_lea.vmem %s12, 8
  %1382 = vst.msk [vmem:[%s1381] sm:$0xff] %vm158, %v1379
  %1384 = vrot.lane.b32.xlu0 %v1363, 96
  %v1385 = vpop.permute.xlu0 %1384
  %s1387 = scalar_lea.vmem %s13, 8
  %1388 = vst.msk [vmem:[%s1387] sm:$0xff] %vm158, %v1385
  %v1389 = vmax.f32 %v1369, 0.0
  %v1391 = vperm.slane %v146, 0
  %1394 = vrot.lane.b32.xlu0 %v1389, 32
  %v1395 = vpop.permute.xlu0 %1394
  %v1396 = vsel %vm158, %v1395, 0
  %1398 = vmatpush.msra.mxu0 0.0
  %1399 = vmatpush.msra.mxu0 0.0
  %1400 = vmatpush.msra.mxu0 0.0
  %1401 = vmatpush.msra.mxu0 0.0
  %1402 = vmatpush.msra.mxu0 0.0
  %1403 = vmatpush.msra.mxu0 0.0
  %1404 = vmatpush.msra.mxu0 0.0
  %1405 = vmatpush.msra.mxu0 0.0
  %1406 = vmatpush.msra.mxu0 0.0
  %1407 = vmatpush.msra.mxu0 0.0
  %1408 = vmatpush.msra.mxu0 0.0
  %1409 = vmatpush.msra.mxu0 0.0
  %1410 = vmatpush.msra.mxu0 %v145
  %1411 = vmatpush.msra.mxu0 %v144
  %1412 = vmatpush.msra.mxu0 %v143
  %1413 = vmatpush.msra.mxu0 %v142
  %1414 = vmatmul.f32.gmra.mxu0 %v1396
  %v1415 = vpop.f32.mrf.mxu0
  %v1416 = vadd.f32 %v1391, %v1415
  %1417 = vdwg.mxu0
  %vm1418 = vcmask 31744
  %1419 = vst.msk [vmem:[%s11] sm:$0xff] %vm1418, %v1416
  // Predicated region
  $region46: #{lstmnet_forward.1} parent=0 // pred_check
    _
  $region47: #{lstmnet_forward.1} parent=0 // pred_check_branch
    %1421 = sbr.rel (0) target = $region49
  $region48: #{lstmnet_forward.1} parent=0 // pred_region
    _
  $region49: #{lstmnet_forward.1} parent=0 // pred_fallthru
    _
  // Predicated region
  $region50: #{lstmnet_forward.1} parent=0 // pred_check
    _
  $region51: #{lstmnet_forward.1} parent=0 // pred_check_branch
    %1423 = sbr.rel (0) target = $region53
  $region52: #{lstmnet_forward.1} parent=0 // pred_region
    _
  $region53: #{lstmnet_forward.1} parent=0 // pred_fallthru
    _
  // Predicated region
  $region54: #{lstmnet_forward.1} parent=0 // pred_check
    _
  $region55: #{lstmnet_forward.1} parent=0 // pred_check_branch
    %1425 = sbr.rel (0) target = $region57
  $region56: #{lstmnet_forward.1} parent=0 // pred_region
    _
  $region57: #{lstmnet_forward.1} parent=0 // pred_fallthru
    _
  // Predicated region
  $region58: #{lstmnet_forward.1} parent=0 // pred_check
    _
  $region59: #{lstmnet_forward.1} parent=0 // pred_check_branch
    %1427 = sbr.rel (0) target = $region61
  $region60: #{lstmnet_forward.1} parent=0 // pred_region
    _
  $region61: #{lstmnet_forward.1} parent=0 // pred_fallthru
    _
  // Predicated region
  $region62: #{lstmnet_forward.1} parent=0 // pred_check
    _
  $region63: #{lstmnet_forward.1} parent=0 // pred_check_branch
    %1429 = sbr.rel (0) target = $region65
  $region64: #{lstmnet_forward.1} parent=0 // pred_region
    _
  $region65: #{lstmnet_forward.1} parent=0 // pred_fallthru
    _
  // Predicated region
  $region66: #{lstmnet_forward.1} parent=0 // pred_check
    _
  $region67: #{lstmnet_forward.1} parent=0 // pred_check_branch
    %1431 = sbr.rel (0) target = $region69
  $region68: #{lstmnet_forward.1} parent=0 // pred_region
    _
  $region69: #{lstmnet_forward.1} parent=0 // pred_fallthru
    _

</llo_original>
